<compile_context>
chip_gen: v7x
topology: tpu7x:2x2x1
jax: 0.10.0
libtpu: 0.0.40
codegen_flags: <defaults>
</compile_context>

<pallas_src>
import functools
import math

import jax
import jax.numpy as jnp
from jax.experimental import pallas as pl
from jax.experimental.pallas import tpu as pltpu

LN_EPS = 1e-5      # PyTorch LayerNorm default
OUT_PAD = 128      # lane-dense head-output width (sliced back to OUT in wrapper)


def _layer_norm(x, gamma, beta):
    mu = jnp.mean(x, axis=-1, keepdims=True)
    var = jnp.mean((x - mu) ** 2, axis=-1, keepdims=True)
    return (x - mu) * jax.lax.rsqrt(var + LN_EPS) * gamma + beta


# ---------------------------------------------------------------------------
# Fused kernel: [encoder layer x L] -> dense head (3) -> sigmoid.
# One grid step == one batch element (grid axis is "parallel" for v7x 2-TC).
# ---------------------------------------------------------------------------
def _fused_transformer_kernel(
        x_ref, wqkv_ref, wo_ref, w1_ref, w2_ref,
        wd1_ref, wd2_ref, wd3_ref, scal_ref, o_ref,
        *, num_layers, nhead, d_model, d_ff, hidden):
    S = x_ref.shape[0]
    D = d_model
    H = nhead
    Dh = D // H
    bf16 = jnp.bfloat16
    f32 = jnp.float32

    h = x_ref[...].astype(f32)                               # (S, D), f32 residual path

    # TODO(synk): switch to lax.fori_loop over the stacked L axis if num_layers
    # grows beyond a handful (static unroll does not bound vreg live ranges).
    for l in range(num_layers):
        r = l * 8
        bqkv = scal_ref[r + 0:r + 1, :3 * D]                 # (1, 3D); q-part pre-scaled
        bo   = scal_ref[r + 1:r + 2, :D]
        b1   = scal_ref[r + 2:r + 3, :d_ff]
        b2   = scal_ref[r + 3:r + 4, :D]
        ln1g = scal_ref[r + 4:r + 5, :D]
        ln1b = scal_ref[r + 5:r + 6, :D]
        ln2g = scal_ref[r + 6:r + 7, :D]
        ln2b = scal_ref[r + 7:r + 8, :D]

        # ---- fused QKV projection: single (S, D) @ (D, 3D) MXU matmul
        qkv = jnp.dot(h.astype(bf16), wqkv_ref[l],
                      preferred_element_type=f32) + bqkv     # (S, 3D)

        # split heads (static lane slices; heads become the leading batch dim)
        q3 = jnp.stack([qkv[:, 0 * D + i * Dh: 0 * D + (i + 1) * Dh] for i in range(H)])
        k3 = jnp.stack([qkv[:, 1 * D + i * Dh: 1 * D + (i + 1) * Dh] for i in range(H)])
        v3 = jnp.stack([qkv[:, 2 * D + i * Dh: 2 * D + (i + 1) * Dh] for i in range(H)])

        # ---- batched-over-heads attention (scale folded into wq/bq at pack time)
        s = jnp.einsum('hqd,hkd->hqk', q3.astype(bf16), k3.astype(bf16),
                       preferred_element_type=f32)           # (H, S, S)
        s = s - jnp.max(s, axis=-1, keepdims=True)
        p = jnp.exp(s)
        p = p * pl.reciprocal(jnp.sum(p, axis=-1, keepdims=True), approx=True)
        a = jnp.einsum('hqk,hkd->hqd', p.astype(bf16), v3.astype(bf16),
                       preferred_element_type=f32)           # (H, S, Dh)

        # ---- concat heads + single (S, D) @ (D, D) output projection
        a_cat = jnp.concatenate([a[i] for i in range(H)], axis=-1)   # (S, D)
        attn = jnp.dot(a_cat.astype(bf16), wo_ref[l],
                       preferred_element_type=f32) + bo

        # ---- residual + LayerNorm 1 (post-norm), then FFN (relu), residual + LN2
        h1 = _layer_norm(h + attn, ln1g, ln1b)

        f = jnp.dot(h1.astype(bf16), w1_ref[l], preferred_element_type=f32) + b1
        f = jnp.maximum(f, 0.0)
        f = jnp.dot(f.astype(bf16), w2_ref[l], preferred_element_type=f32) + b2

        h = _layer_norm(h1 + f, ln2g, ln2b)

    # ---- dense head (dense_layers == 3): ll1 -> relu -> ll2 -> relu -> ll3 -> sigmoid
    rd = num_layers * 8
    bd1 = scal_ref[rd + 0:rd + 1, :hidden]
    bd2 = scal_ref[rd + 1:rd + 2, :hidden]
    bd3 = scal_ref[rd + 2:rd + 3, :]                         # zero-padded to OUT_PAD

    d = jnp.dot(h.astype(bf16), wd1_ref[...], preferred_element_type=f32) + bd1
    d = jnp.maximum(d, 0.0)
    d = jnp.dot(d.astype(bf16), wd2_ref[...], preferred_element_type=f32) + bd2
    d = jnp.maximum(d, 0.0)
    d = jnp.dot(d.astype(bf16), wd3_ref[...], preferred_element_type=f32) + bd3  # (S, OUT_PAD)

    # sigmoid(x) = 0.5 * (1 + tanh(x/2))  -- numerically stable, EUP-friendly
    o_ref[...] = (0.5 * (jnp.tanh(0.5 * d) + 1.0)).astype(o_ref.dtype)


# ---------------------------------------------------------------------------
# Wrapper-side weight packing (free layout plumbing, done once).
# Raw params are in PyTorch layout (weight = (out, in)).
# ---------------------------------------------------------------------------
def pack_params(enc_layers, dense_weights, nhead):
    L = len(enc_layers)
    D = enc_layers[0]['in_proj_weight'].shape[1]
    Dh = D // nhead
    DFF = enc_layers[0]['linear1_weight'].shape[0]
    HIDDEN = dense_weights[0][0].shape[0]
    OUT = dense_weights[2][0].shape[0]
    scale = 1.0 / math.sqrt(Dh)

    wqkv, wo, w1, w2 = [], [], [], []
    scal = jnp.zeros((L * 8 + 3, 128), jnp.float32)          # all tiny f32 params

    for l, p in enumerate(enc_layers):
        w_in = p['in_proj_weight'].T                          # (D, 3D) = (in, out)
        w_in = w_in.at[:, :D].multiply(scale)                 # fold 1/sqrt(Dh) into wq
        wqkv.append(w_in)
        wo.append(p['out_proj_weight'].T)                     # (D, D)
        w1.append(p['linear1_weight'].T)                      # (D, DFF)
        w2.append(p['linear2_weight'].T)                      # (DFF, D)

        bqkv = p['in_proj_bias'].at[:D].multiply(scale)       # fold scale into bq
        r = l * 8
        scal = scal.at[r + 0, :3 * D].set(bqkv)
        scal = scal.at[r + 1, :D].set(p['out_proj_bias'])
        scal = scal.at[r + 2, :DFF].set(p['linear1_bias'])
        scal = scal.at[r + 3, :D].set(p['linear2_bias'])
        scal = scal.at[r + 4, :D].set(p['norm1_weight'])
        scal = scal.at[r + 5, :D].set(p['norm1_bias'])
        scal = scal.at[r + 6, :D].set(p['norm2_weight'])
        scal = scal.at[r + 7, :D].set(p['norm2_bias'])

    (w_ll1, b_ll1), (w_ll2, b_ll2), (w_ll3, b_ll3) = dense_weights
    rd = L * 8
    scal = scal.at[rd + 0, :HIDDEN].set(b_ll1)
    scal = scal.at[rd + 1, :HIDDEN].set(b_ll2)
    scal = scal.at[rd + 2, :OUT].set(b_ll3)                   # padding stays 0 -> sliced away

    wd3 = jnp.zeros((HIDDEN, OUT_PAD), jnp.float32).at[:, :OUT].set(w_ll3.T)

    return dict(
        nhead=nhead, num_layers=L, d_model=D, d_ff=DFF, hidden=HIDDEN, out=OUT,
        wqkv=jnp.stack(wqkv).astype(jnp.bfloat16),            # (L, D, 3D)
        wo=jnp.stack(wo).astype(jnp.bfloat16),                # (L, D, D)
        w1=jnp.stack(w1).astype(jnp.bfloat16),                # (L, D, DFF)
        w2=jnp.stack(w2).astype(jnp.bfloat16),                # (L, DFF, D)
        wd1=w_ll1.T.astype(jnp.bfloat16),                     # (D, HIDDEN)
        wd2=w_ll2.T.astype(jnp.bfloat16),                     # (HIDDEN, HIDDEN)
        wd3=wd3.astype(jnp.bfloat16),                         # (HIDDEN, OUT_PAD)
        scal=scal,                                            # (L*8+3, 128) f32
    )


def transformer_forward(x, packed):
    """x: (B, S, D) float32, batch_first=True.  Returns (B, S, output_size)."""
    B, S, D = x.shape
    OUT = packed['out']

    kernel = functools.partial(
        _fused_transformer_kernel,
        num_layers=packed['num_layers'], nhead=packed['nhead'],
        d_model=packed['d_model'], d_ff=packed['d_ff'], hidden=packed['hidden'])

    weight_args = [packed['wqkv'], packed['wo'], packed['w1'], packed['w2'],
                   packed['wd1'], packed['wd2'], packed['wd3'], packed['scal']]

    def resident_spec(a):   # full array, same block at every grid step
        return pl.BlockSpec(a.shape, lambda b, _nd=a.ndim: (0,) * _nd)

    out_padded = pl.pallas_call(
        kernel,
        out_shape=jax.ShapeDtypeStruct((B, S, OUT_PAD), x.dtype),
        grid=(B,),                                            # one batch element / step
        in_specs=[pl.BlockSpec((None, S, D), lambda b: (b, 0, 0))]
                 + [resident_spec(a) for a in weight_args],
        out_specs=pl.BlockSpec((None, S, OUT_PAD), lambda b: (b, 0, 0)),
        compiler_params=pltpu.CompilerParams(
            dimension_semantics=("parallel",)),               # v7x: 2nd TC gets other batch
    )(x, *weight_args)
    return out_padded[:, :, :OUT]                             # drop lane padding


if __name__ == "__main__":
    # model_dict (synthetic, small):
    #   d_model=input_size=32, nhead=4, dim_feedforward=64, dropout=0.0,
    #   activation='relu', batch_first=True, num_encoder_layers=2,
    #   hidden_size=32, dense_layers=3, output_size=8
    B, S = 2, 8
    D = 32
    NHEAD = 4
    DFF = 64
    NUM_LAYERS = 2
    HIDDEN = 32
    OUT = 8

    key = jax.random.PRNGKey(0)
    keys = iter(jax.random.split(key, 64))

    def randn(shape, scale=0.1):
        return jax.random.normal(next(keys), shape, jnp.float32) * scale

    # Per-layer params in PyTorch nn.TransformerEncoderLayer layout (out, in).
    enc_layers = []
    for _ in range(NUM_LAYERS):
        enc_layers.append(dict(
            in_proj_weight=randn((3 * D, D)), in_proj_bias=randn((3 * D,)),
            out_proj_weight=randn((D, D)), out_proj_bias=randn((D,)),
            linear1_weight=randn((DFF, D)), linear1_bias=randn((DFF,)),
            linear2_weight=randn((D, DFF)), linear2_bias=randn((D,)),
            norm1_weight=jnp.ones((D,), jnp.float32), norm1_bias=jnp.zeros((D,), jnp.float32),
            norm2_weight=jnp.ones((D,), jnp.float32), norm2_bias=jnp.zeros((D,), jnp.float32),
        ))

    # dense_layers = 3: ll1 (D->HIDDEN), ll2 (HIDDEN->HIDDEN), ll3 (HIDDEN->OUT)
    dense_weights = [
        (randn((HIDDEN, D)), randn((HIDDEN,))),
        (randn((HIDDEN, HIDDEN)), randn((HIDDEN,))),
        (randn((OUT, HIDDEN)), randn((OUT,))),
    ]

    x = jax.random.normal(next(keys), (B, S, D), jnp.float32)

    packed = pack_params(enc_layers, dense_weights, NHEAD)
    out = transformer_forward(x, packed)
    jax.block_until_ready(out)
    assert out.shape == (B, S, OUT), out.shape
    assert bool(jnp.all(jnp.isfinite(out)))
    print("KERNEL_OK")
</pallas_src>

<mosaic_0001>
module attributes {stable_mosaic.version = 11 : i64} {
  func.func @_fused_transformer_kernel(%arg0: i32, %arg1: memref<1x8x32xf32, #tpu.memory_space<vmem>>, %arg2: memref<2x32x96xbf16, #tpu.memory_space<vmem>>, %arg3: memref<2x32x32xbf16, #tpu.memory_space<vmem>>, %arg4: memref<2x32x64xbf16, #tpu.memory_space<vmem>>, %arg5: memref<2x64x32xbf16, #tpu.memory_space<vmem>>, %arg6: memref<32x32xbf16, #tpu.memory_space<vmem>>, %arg7: memref<32x32xbf16, #tpu.memory_space<vmem>>, %arg8: memref<32x128xbf16, #tpu.memory_space<vmem>>, %arg9: memref<19x128xf32, #tpu.memory_space<vmem>>, %arg10: memref<1x8x128xf32, #tpu.memory_space<vmem>>) attributes {dimension_semantics = [#tpu.dimension_semantics<parallel>], iteration_bounds = array<i64: 2>, scalar_prefetch = 0 : i64, scratch_operands = 0 : i64, tpu.core_type = #tpu.core_type<tc>, window_params = [{transform_indices = @transform_0, window_bounds = array<i64: 1, 8, 32>}, {pipeline_mode = #tpu.pipeline_mode<synchronous>, transform_indices = @transform_1, window_bounds = array<i64: 2, 32, 96>}, {pipeline_mode = #tpu.pipeline_mode<synchronous>, transform_indices = @transform_2, window_bounds = array<i64: 2, 32, 32>}, {pipeline_mode = #tpu.pipeline_mode<synchronous>, transform_indices = @transform_3, window_bounds = array<i64: 2, 32, 64>}, {pipeline_mode = #tpu.pipeline_mode<synchronous>, transform_indices = @transform_4, window_bounds = array<i64: 2, 64, 32>}, {pipeline_mode = #tpu.pipeline_mode<synchronous>, transform_indices = @transform_5, window_bounds = array<i64: 32, 32>}, {pipeline_mode = #tpu.pipeline_mode<synchronous>, transform_indices = @transform_6, window_bounds = array<i64: 32, 32>}, {pipeline_mode = #tpu.pipeline_mode<synchronous>, transform_indices = @transform_7, window_bounds = array<i64: 32, 128>}, {pipeline_mode = #tpu.pipeline_mode<synchronous>, transform_indices = @transform_8, window_bounds = array<i64: 19, 128>}, {transform_indices = @transform_9, window_bounds = array<i64: 1, 8, 128>}]} {
    %c0 = arith.constant 0 : index
    %c0_0 = arith.constant 0 : index
    %c0_1 = arith.constant 0 : index
    %0 = vector.load %arg1[%c0, %c0_0, %c0_1] : memref<1x8x32xf32, #tpu.memory_space<vmem>>, vector<1x8x32xf32>
    %1 = vector.shape_cast %0 : vector<1x8x32xf32> to vector<8x32xf32>
    %c0_2 = arith.constant 0 : index
    %c0_3 = arith.constant 0 : index
    %2 = vector.load %arg9[%c0_2, %c0_3] : memref<19x128xf32, #tpu.memory_space<vmem>>, vector<1x96xf32>
    %c1 = arith.constant 1 : index
    %c0_4 = arith.constant 0 : index
    %3 = vector.load %arg9[%c1, %c0_4] : memref<19x128xf32, #tpu.memory_space<vmem>>, vector<1x32xf32>
    %c2 = arith.constant 2 : index
    %c0_5 = arith.constant 0 : index
    %4 = vector.load %arg9[%c2, %c0_5] : memref<19x128xf32, #tpu.memory_space<vmem>>, vector<1x64xf32>
    %c3 = arith.constant 3 : index
    %c0_6 = arith.constant 0 : index
    %5 = vector.load %arg9[%c3, %c0_6] : memref<19x128xf32, #tpu.memory_space<vmem>>, vector<1x32xf32>
    %c4 = arith.constant 4 : index
    %c0_7 = arith.constant 0 : index
    %6 = vector.load %arg9[%c4, %c0_7] : memref<19x128xf32, #tpu.memory_space<vmem>>, vector<1x32xf32>
    %c5 = arith.constant 5 : index
    %c0_8 = arith.constant 0 : index
    %7 = vector.load %arg9[%c5, %c0_8] : memref<19x128xf32, #tpu.memory_space<vmem>>, vector<1x32xf32>
    %c6 = arith.constant 6 : index
    %c0_9 = arith.constant 0 : index
    %8 = vector.load %arg9[%c6, %c0_9] : memref<19x128xf32, #tpu.memory_space<vmem>>, vector<1x32xf32>
    %c7 = arith.constant 7 : index
    %c0_10 = arith.constant 0 : index
    %9 = vector.load %arg9[%c7, %c0_10] : memref<19x128xf32, #tpu.memory_space<vmem>>, vector<1x32xf32>
    %10 = arith.truncf %1 : vector<8x32xf32> to vector<8x32xbf16>
    %c0_11 = arith.constant 0 : index
    %c0_12 = arith.constant 0 : index
    %c0_13 = arith.constant 0 : index
    %11 = vector.load %arg2[%c0_11, %c0_12, %c0_13] : memref<2x32x96xbf16, #tpu.memory_space<vmem>>, vector<1x32x96xbf16>
    %12 = vector.shape_cast %11 : vector<1x32x96xbf16> to vector<32x96xbf16>
    %cst = arith.constant dense<0.000000e+00> : vector<8x96xf32>
    %13 = tpu.matmul %10, %12, %cst {dimension_numbers = #tpu.dot_dimension_numbers<[1], [0], [0], [1], [0, 0, 1, 1], [], []>} : vector<8x32xbf16>, vector<32x96xbf16>, vector<8x96xf32> -> vector<8x96xf32>
    %14 = vector.broadcast %2 : vector<1x96xf32> to vector<8x96xf32>
    %15 = arith.addf %13, %14 : vector<8x96xf32>
    %16 = vector.extract_strided_slice %15 {offsets = [0, 0], sizes = [8, 8], strides = [1, 1]} : vector<8x96xf32> to vector<8x8xf32>
    %17 = vector.extract_strided_slice %15 {offsets = [0, 8], sizes = [8, 8], strides = [1, 1]} : vector<8x96xf32> to vector<8x8xf32>
    %18 = vector.extract_strided_slice %15 {offsets = [0, 16], sizes = [8, 8], strides = [1, 1]} : vector<8x96xf32> to vector<8x8xf32>
    %19 = vector.extract_strided_slice %15 {offsets = [0, 24], sizes = [8, 8], strides = [1, 1]} : vector<8x96xf32> to vector<8x8xf32>
    %20 = vector.shape_cast %16 : vector<8x8xf32> to vector<1x8x8xf32>
    %21 = vector.shape_cast %17 : vector<8x8xf32> to vector<1x8x8xf32>
    %22 = vector.shape_cast %18 : vector<8x8xf32> to vector<1x8x8xf32>
    %23 = vector.shape_cast %19 : vector<8x8xf32> to vector<1x8x8xf32>
    %24 = tpu.concatenate %20, %21, %22, %23 in 0 : vector<1x8x8xf32>, vector<1x8x8xf32>, vector<1x8x8xf32>, vector<1x8x8xf32> -> vector<4x8x8xf32>
    %25 = vector.extract_strided_slice %15 {offsets = [0, 32], sizes = [8, 8], strides = [1, 1]} : vector<8x96xf32> to vector<8x8xf32>
    %26 = vector.extract_strided_slice %15 {offsets = [0, 40], sizes = [8, 8], strides = [1, 1]} : vector<8x96xf32> to vector<8x8xf32>
    %27 = vector.extract_strided_slice %15 {offsets = [0, 48], sizes = [8, 8], strides = [1, 1]} : vector<8x96xf32> to vector<8x8xf32>
    %28 = vector.extract_strided_slice %15 {offsets = [0, 56], sizes = [8, 8], strides = [1, 1]} : vector<8x96xf32> to vector<8x8xf32>
    %29 = vector.shape_cast %25 : vector<8x8xf32> to vector<1x8x8xf32>
    %30 = vector.shape_cast %26 : vector<8x8xf32> to vector<1x8x8xf32>
    %31 = vector.shape_cast %27 : vector<8x8xf32> to vector<1x8x8xf32>
    %32 = vector.shape_cast %28 : vector<8x8xf32> to vector<1x8x8xf32>
    %33 = tpu.concatenate %29, %30, %31, %32 in 0 : vector<1x8x8xf32>, vector<1x8x8xf32>, vector<1x8x8xf32>, vector<1x8x8xf32> -> vector<4x8x8xf32>
    %34 = vector.extract_strided_slice %15 {offsets = [0, 64], sizes = [8, 8], strides = [1, 1]} : vector<8x96xf32> to vector<8x8xf32>
    %35 = vector.extract_strided_slice %15 {offsets = [0, 72], sizes = [8, 8], strides = [1, 1]} : vector<8x96xf32> to vector<8x8xf32>
    %36 = vector.extract_strided_slice %15 {offsets = [0, 80], sizes = [8, 8], strides = [1, 1]} : vector<8x96xf32> to vector<8x8xf32>
    %37 = vector.extract_strided_slice %15 {offsets = [0, 88], sizes = [8, 8], strides = [1, 1]} : vector<8x96xf32> to vector<8x8xf32>
    %38 = vector.shape_cast %34 : vector<8x8xf32> to vector<1x8x8xf32>
    %39 = vector.shape_cast %35 : vector<8x8xf32> to vector<1x8x8xf32>
    %40 = vector.shape_cast %36 : vector<8x8xf32> to vector<1x8x8xf32>
    %41 = vector.shape_cast %37 : vector<8x8xf32> to vector<1x8x8xf32>
    %42 = tpu.concatenate %38, %39, %40, %41 in 0 : vector<1x8x8xf32>, vector<1x8x8xf32>, vector<1x8x8xf32>, vector<1x8x8xf32> -> vector<4x8x8xf32>
    %43 = arith.truncf %24 : vector<4x8x8xf32> to vector<4x8x8xbf16>
    %44 = arith.truncf %33 : vector<4x8x8xf32> to vector<4x8x8xbf16>
    "tpu.trace_start"() <{level = 10 : i32, message = "hqd,hkd->hqk"}> : () -> ()
    %cst_14 = arith.constant dense<0.000000e+00> : vector<4x8x8xf32>
    %45 = tpu.matmul %43, %44, %cst_14 {dimension_numbers = #tpu.dot_dimension_numbers<[2], [2], [1], [1], [0, 0, 0, 1, 1, 1], [0], [0]>} : vector<4x8x8xbf16>, vector<4x8x8xbf16>, vector<4x8x8xf32> -> vector<4x8x8xf32>
    "tpu.trace_stop"() : () -> ()
    %cst_15 = arith.constant dense<0xFF800000> : vector<4x8xf32>
    %46 = vector.multi_reduction <maximumf>, %45, %cst_15 [2] : vector<4x8x8xf32> to vector<4x8xf32>
    %47 = vector.shape_cast %46 : vector<4x8xf32> to vector<4x8x1xf32>
    %48 = vector.broadcast %47 : vector<4x8x1xf32> to vector<4x8x8xf32>
    %49 = arith.subf %45, %48 : vector<4x8x8xf32>
    %50 = math.exp %49 : vector<4x8x8xf32>
    %cst_16 = arith.constant dense<0.000000e+00> : vector<4x8xf32>
    %51 = vector.multi_reduction <add>, %50, %cst_16 [2] : vector<4x8x8xf32> to vector<4x8xf32>
    %52 = vector.shape_cast %51 : vector<4x8xf32> to vector<4x8x1xf32>
    %53 = tpu.reciprocal %52 {approx = true} : vector<4x8x1xf32> -> vector<4x8x1xf32>
    %54 = vector.broadcast %53 : vector<4x8x1xf32> to vector<4x8x8xf32>
    %55 = arith.mulf %50, %54 : vector<4x8x8xf32>
    %56 = arith.truncf %55 : vector<4x8x8xf32> to vector<4x8x8xbf16>
    %57 = arith.truncf %42 : vector<4x8x8xf32> to vector<4x8x8xbf16>
    "tpu.trace_start"() <{level = 10 : i32, message = "hqk,hkd->hqd"}> : () -> ()
    %cst_17 = arith.constant dense<0.000000e+00> : vector<4x8x8xf32>
    %58 = tpu.matmul %56, %57, %cst_17 {dimension_numbers = #tpu.dot_dimension_numbers<[2], [1], [1], [2], [0, 0, 0, 1, 1, 2], [0], [0]>} : vector<4x8x8xbf16>, vector<4x8x8xbf16>, vector<4x8x8xf32> -> vector<4x8x8xf32>
    "tpu.trace_stop"() : () -> ()
    %59 = vector.extract_strided_slice %58 {offsets = [0, 0, 0], sizes = [1, 8, 8], strides = [1, 1, 1]} : vector<4x8x8xf32> to vector<1x8x8xf32>
    %60 = vector.shape_cast %59 : vector<1x8x8xf32> to vector<8x8xf32>
    %61 = vector.extract_strided_slice %58 {offsets = [1, 0, 0], sizes = [1, 8, 8], strides = [1, 1, 1]} : vector<4x8x8xf32> to vector<1x8x8xf32>
    %62 = vector.shape_cast %61 : vector<1x8x8xf32> to vector<8x8xf32>
    %63 = vector.extract_strided_slice %58 {offsets = [2, 0, 0], sizes = [1, 8, 8], strides = [1, 1, 1]} : vector<4x8x8xf32> to vector<1x8x8xf32>
    %64 = vector.shape_cast %63 : vector<1x8x8xf32> to vector<8x8xf32>
    %65 = vector.extract_strided_slice %58 {offsets = [3, 0, 0], sizes = [1, 8, 8], strides = [1, 1, 1]} : vector<4x8x8xf32> to vector<1x8x8xf32>
    %66 = vector.shape_cast %65 : vector<1x8x8xf32> to vector<8x8xf32>
    %67 = tpu.concatenate %60, %62, %64, %66 in 1 : vector<8x8xf32>, vector<8x8xf32>, vector<8x8xf32>, vector<8x8xf32> -> vector<8x32xf32>
    %68 = arith.truncf %67 : vector<8x32xf32> to vector<8x32xbf16>
    %c0_18 = arith.constant 0 : index
    %c0_19 = arith.constant 0 : index
    %c0_20 = arith.constant 0 : index
    %69 = vector.load %arg3[%c0_18, %c0_19, %c0_20] : memref<2x32x32xbf16, #tpu.memory_space<vmem>>, vector<1x32x32xbf16>
    %70 = vector.shape_cast %69 : vector<1x32x32xbf16> to vector<32x32xbf16>
    %cst_21 = arith.constant dense<0.000000e+00> : vector<8x32xf32>
    %71 = tpu.matmul %68, %70, %cst_21 {dimension_numbers = #tpu.dot_dimension_numbers<[1], [0], [0], [1], [0, 0, 1, 1], [], []>} : vector<8x32xbf16>, vector<32x32xbf16>, vector<8x32xf32> -> vector<8x32xf32>
    %72 = vector.broadcast %3 : vector<1x32xf32> to vector<8x32xf32>
    %73 = arith.addf %71, %72 : vector<8x32xf32>
    %74 = arith.addf %1, %73 : vector<8x32xf32>
    %cst_22 = arith.constant dense<0.000000e+00> : vector<8xf32>
    %75 = vector.multi_reduction <add>, %74, %cst_22 [1] : vector<8x32xf32> to vector<8xf32>
    %76 = vector.shape_cast %75 : vector<8xf32> to vector<8x1xf32>
    %cst_23 = arith.constant 3.200000e+01 : f32
    %77 = vector.broadcast %cst_23 : f32 to vector<8x1xf32>
    %78 = arith.divf %76, %77 : vector<8x1xf32>
    %79 = vector.broadcast %78 : vector<8x1xf32> to vector<8x32xf32>
    %80 = arith.subf %74, %79 : vector<8x32xf32>
    %81 = arith.mulf %80, %80 : vector<8x32xf32>
    %cst_24 = arith.constant dense<0.000000e+00> : vector<8xf32>
    %82 = vector.multi_reduction <add>, %81, %cst_24 [1] : vector<8x32xf32> to vector<8xf32>
    %83 = vector.shape_cast %82 : vector<8xf32> to vector<8x1xf32>
    %cst_25 = arith.constant 3.200000e+01 : f32
    %84 = vector.broadcast %cst_25 : f32 to vector<8x1xf32>
    %85 = arith.divf %83, %84 : vector<8x1xf32>
    %86 = vector.broadcast %78 : vector<8x1xf32> to vector<8x32xf32>
    %87 = arith.subf %74, %86 : vector<8x32xf32>
    %cst_26 = arith.constant 9.99999974E-6 : f32
    %88 = vector.broadcast %cst_26 : f32 to vector<8x1xf32>
    %89 = arith.addf %85, %88 : vector<8x1xf32>
    %90 = math.rsqrt %89 : vector<8x1xf32>
    %91 = vector.broadcast %90 : vector<8x1xf32> to vector<8x32xf32>
    %92 = arith.mulf %87, %91 : vector<8x32xf32>
    %93 = vector.broadcast %6 : vector<1x32xf32> to vector<8x32xf32>
    %94 = arith.mulf %92, %93 : vector<8x32xf32>
    %95 = vector.broadcast %7 : vector<1x32xf32> to vector<8x32xf32>
    %96 = arith.addf %94, %95 : vector<8x32xf32>
    %97 = arith.truncf %96 : vector<8x32xf32> to vector<8x32xbf16>
    %c0_27 = arith.constant 0 : index
    %c0_28 = arith.constant 0 : index
    %c0_29 = arith.constant 0 : index
    %98 = vector.load %arg4[%c0_27, %c0_28, %c0_29] : memref<2x32x64xbf16, #tpu.memory_space<vmem>>, vector<1x32x64xbf16>
    %99 = vector.shape_cast %98 : vector<1x32x64xbf16> to vector<32x64xbf16>
    %cst_30 = arith.constant dense<0.000000e+00> : vector<8x64xf32>
    %100 = tpu.matmul %97, %99, %cst_30 {dimension_numbers = #tpu.dot_dimension_numbers<[1], [0], [0], [1], [0, 0, 1, 1], [], []>} : vector<8x32xbf16>, vector<32x64xbf16>, vector<8x64xf32> -> vector<8x64xf32>
    %101 = vector.broadcast %4 : vector<1x64xf32> to vector<8x64xf32>
    %102 = arith.addf %100, %101 : vector<8x64xf32>
    %cst_31 = arith.constant 0.000000e+00 : f32
    %103 = vector.broadcast %cst_31 : f32 to vector<8x64xf32>
    %104 = arith.maximumf %102, %103 : vector<8x64xf32>
    %105 = arith.truncf %104 : vector<8x64xf32> to vector<8x64xbf16>
    %c0_32 = arith.constant 0 : index
    %c0_33 = arith.constant 0 : index
    %c0_34 = arith.constant 0 : index
    %106 = vector.load %arg5[%c0_32, %c0_33, %c0_34] : memref<2x64x32xbf16, #tpu.memory_space<vmem>>, vector<1x64x32xbf16>
    %107 = vector.shape_cast %106 : vector<1x64x32xbf16> to vector<64x32xbf16>
    %cst_35 = arith.constant dense<0.000000e+00> : vector<8x32xf32>
    %108 = tpu.matmul %105, %107, %cst_35 {dimension_numbers = #tpu.dot_dimension_numbers<[1], [0], [0], [1], [0, 0, 1, 1], [], []>} : vector<8x64xbf16>, vector<64x32xbf16>, vector<8x32xf32> -> vector<8x32xf32>
    %109 = vector.broadcast %5 : vector<1x32xf32> to vector<8x32xf32>
    %110 = arith.addf %108, %109 : vector<8x32xf32>
    %111 = arith.addf %96, %110 : vector<8x32xf32>
    %cst_36 = arith.constant dense<0.000000e+00> : vector<8xf32>
    %112 = vector.multi_reduction <add>, %111, %cst_36 [1] : vector<8x32xf32> to vector<8xf32>
    %113 = vector.shape_cast %112 : vector<8xf32> to vector<8x1xf32>
    %cst_37 = arith.constant 3.200000e+01 : f32
    %114 = vector.broadcast %cst_37 : f32 to vector<8x1xf32>
    %115 = arith.divf %113, %114 : vector<8x1xf32>
    %116 = vector.broadcast %115 : vector<8x1xf32> to vector<8x32xf32>
    %117 = arith.subf %111, %116 : vector<8x32xf32>
    %118 = arith.mulf %117, %117 : vector<8x32xf32>
    %cst_38 = arith.constant dense<0.000000e+00> : vector<8xf32>
    %119 = vector.multi_reduction <add>, %118, %cst_38 [1] : vector<8x32xf32> to vector<8xf32>
    %120 = vector.shape_cast %119 : vector<8xf32> to vector<8x1xf32>
    %cst_39 = arith.constant 3.200000e+01 : f32
    %121 = vector.broadcast %cst_39 : f32 to vector<8x1xf32>
    %122 = arith.divf %120, %121 : vector<8x1xf32>
    %123 = vector.broadcast %115 : vector<8x1xf32> to vector<8x32xf32>
    %124 = arith.subf %111, %123 : vector<8x32xf32>
    %cst_40 = arith.constant 9.99999974E-6 : f32
    %125 = vector.broadcast %cst_40 : f32 to vector<8x1xf32>
    %126 = arith.addf %122, %125 : vector<8x1xf32>
    %127 = math.rsqrt %126 : vector<8x1xf32>
    %128 = vector.broadcast %127 : vector<8x1xf32> to vector<8x32xf32>
    %129 = arith.mulf %124, %128 : vector<8x32xf32>
    %130 = vector.broadcast %8 : vector<1x32xf32> to vector<8x32xf32>
    %131 = arith.mulf %129, %130 : vector<8x32xf32>
    %132 = vector.broadcast %9 : vector<1x32xf32> to vector<8x32xf32>
    %133 = arith.addf %131, %132 : vector<8x32xf32>
    %c8 = arith.constant 8 : index
    %c0_41 = arith.constant 0 : index
    %134 = vector.load %arg9[%c8, %c0_41] : memref<19x128xf32, #tpu.memory_space<vmem>>, vector<1x96xf32>
    %c9 = arith.constant 9 : index
    %c0_42 = arith.constant 0 : index
    %135 = vector.load %arg9[%c9, %c0_42] : memref<19x128xf32, #tpu.memory_space<vmem>>, vector<1x32xf32>
    %c10 = arith.constant 10 : index
    %c0_43 = arith.constant 0 : index
    %136 = vector.load %arg9[%c10, %c0_43] : memref<19x128xf32, #tpu.memory_space<vmem>>, vector<1x64xf32>
    %c11 = arith.constant 11 : index
    %c0_44 = arith.constant 0 : index
    %137 = vector.load %arg9[%c11, %c0_44] : memref<19x128xf32, #tpu.memory_space<vmem>>, vector<1x32xf32>
    %c12 = arith.constant 12 : index
    %c0_45 = arith.constant 0 : index
    %138 = vector.load %arg9[%c12, %c0_45] : memref<19x128xf32, #tpu.memory_space<vmem>>, vector<1x32xf32>
    %c13 = arith.constant 13 : index
    %c0_46 = arith.constant 0 : index
    %139 = vector.load %arg9[%c13, %c0_46] : memref<19x128xf32, #tpu.memory_space<vmem>>, vector<1x32xf32>
    %c14 = arith.constant 14 : index
    %c0_47 = arith.constant 0 : index
    %140 = vector.load %arg9[%c14, %c0_47] : memref<19x128xf32, #tpu.memory_space<vmem>>, vector<1x32xf32>
    %c15 = arith.constant 15 : index
    %c0_48 = arith.constant 0 : index
    %141 = vector.load %arg9[%c15, %c0_48] : memref<19x128xf32, #tpu.memory_space<vmem>>, vector<1x32xf32>
    %142 = arith.truncf %133 : vector<8x32xf32> to vector<8x32xbf16>
    %c1_49 = arith.constant 1 : index
    %c0_50 = arith.constant 0 : index
    %c0_51 = arith.constant 0 : index
    %143 = vector.load %arg2[%c1_49, %c0_50, %c0_51] : memref<2x32x96xbf16, #tpu.memory_space<vmem>>, vector<1x32x96xbf16>
    %144 = vector.shape_cast %143 : vector<1x32x96xbf16> to vector<32x96xbf16>
    %cst_52 = arith.constant dense<0.000000e+00> : vector<8x96xf32>
    %145 = tpu.matmul %142, %144, %cst_52 {dimension_numbers = #tpu.dot_dimension_numbers<[1], [0], [0], [1], [0, 0, 1, 1], [], []>} : vector<8x32xbf16>, vector<32x96xbf16>, vector<8x96xf32> -> vector<8x96xf32>
    %146 = vector.broadcast %134 : vector<1x96xf32> to vector<8x96xf32>
    %147 = arith.addf %145, %146 : vector<8x96xf32>
    %148 = vector.extract_strided_slice %147 {offsets = [0, 0], sizes = [8, 8], strides = [1, 1]} : vector<8x96xf32> to vector<8x8xf32>
    %149 = vector.extract_strided_slice %147 {offsets = [0, 8], sizes = [8, 8], strides = [1, 1]} : vector<8x96xf32> to vector<8x8xf32>
    %150 = vector.extract_strided_slice %147 {offsets = [0, 16], sizes = [8, 8], strides = [1, 1]} : vector<8x96xf32> to vector<8x8xf32>
    %151 = vector.extract_strided_slice %147 {offsets = [0, 24], sizes = [8, 8], strides = [1, 1]} : vector<8x96xf32> to vector<8x8xf32>
    %152 = vector.shape_cast %148 : vector<8x8xf32> to vector<1x8x8xf32>
    %153 = vector.shape_cast %149 : vector<8x8xf32> to vector<1x8x8xf32>
    %154 = vector.shape_cast %150 : vector<8x8xf32> to vector<1x8x8xf32>
    %155 = vector.shape_cast %151 : vector<8x8xf32> to vector<1x8x8xf32>
    %156 = tpu.concatenate %152, %153, %154, %155 in 0 : vector<1x8x8xf32>, vector<1x8x8xf32>, vector<1x8x8xf32>, vector<1x8x8xf32> -> vector<4x8x8xf32>
    %157 = vector.extract_strided_slice %147 {offsets = [0, 32], sizes = [8, 8], strides = [1, 1]} : vector<8x96xf32> to vector<8x8xf32>
    %158 = vector.extract_strided_slice %147 {offsets = [0, 40], sizes = [8, 8], strides = [1, 1]} : vector<8x96xf32> to vector<8x8xf32>
    %159 = vector.extract_strided_slice %147 {offsets = [0, 48], sizes = [8, 8], strides = [1, 1]} : vector<8x96xf32> to vector<8x8xf32>
    %160 = vector.extract_strided_slice %147 {offsets = [0, 56], sizes = [8, 8], strides = [1, 1]} : vector<8x96xf32> to vector<8x8xf32>
    %161 = vector.shape_cast %157 : vector<8x8xf32> to vector<1x8x8xf32>
    %162 = vector.shape_cast %158 : vector<8x8xf32> to vector<1x8x8xf32>
    %163 = vector.shape_cast %159 : vector<8x8xf32> to vector<1x8x8xf32>
    %164 = vector.shape_cast %160 : vector<8x8xf32> to vector<1x8x8xf32>
    %165 = tpu.concatenate %161, %162, %163, %164 in 0 : vector<1x8x8xf32>, vector<1x8x8xf32>, vector<1x8x8xf32>, vector<1x8x8xf32> -> vector<4x8x8xf32>
    %166 = vector.extract_strided_slice %147 {offsets = [0, 64], sizes = [8, 8], strides = [1, 1]} : vector<8x96xf32> to vector<8x8xf32>
    %167 = vector.extract_strided_slice %147 {offsets = [0, 72], sizes = [8, 8], strides = [1, 1]} : vector<8x96xf32> to vector<8x8xf32>
    %168 = vector.extract_strided_slice %147 {offsets = [0, 80], sizes = [8, 8], strides = [1, 1]} : vector<8x96xf32> to vector<8x8xf32>
    %169 = vector.extract_strided_slice %147 {offsets = [0, 88], sizes = [8, 8], strides = [1, 1]} : vector<8x96xf32> to vector<8x8xf32>
    %170 = vector.shape_cast %166 : vector<8x8xf32> to vector<1x8x8xf32>
    %171 = vector.shape_cast %167 : vector<8x8xf32> to vector<1x8x8xf32>
    %172 = vector.shape_cast %168 : vector<8x8xf32> to vector<1x8x8xf32>
    %173 = vector.shape_cast %169 : vector<8x8xf32> to vector<1x8x8xf32>
    %174 = tpu.concatenate %170, %171, %172, %173 in 0 : vector<1x8x8xf32>, vector<1x8x8xf32>, vector<1x8x8xf32>, vector<1x8x8xf32> -> vector<4x8x8xf32>
    %175 = arith.truncf %156 : vector<4x8x8xf32> to vector<4x8x8xbf16>
    %176 = arith.truncf %165 : vector<4x8x8xf32> to vector<4x8x8xbf16>
    "tpu.trace_start"() <{level = 10 : i32, message = "hqd,hkd->hqk"}> : () -> ()
    %cst_53 = arith.constant dense<0.000000e+00> : vector<4x8x8xf32>
    %177 = tpu.matmul %175, %176, %cst_53 {dimension_numbers = #tpu.dot_dimension_numbers<[2], [2], [1], [1], [0, 0, 0, 1, 1, 1], [0], [0]>} : vector<4x8x8xbf16>, vector<4x8x8xbf16>, vector<4x8x8xf32> -> vector<4x8x8xf32>
    "tpu.trace_stop"() : () -> ()
    %cst_54 = arith.constant dense<0xFF800000> : vector<4x8xf32>
    %178 = vector.multi_reduction <maximumf>, %177, %cst_54 [2] : vector<4x8x8xf32> to vector<4x8xf32>
    %179 = vector.shape_cast %178 : vector<4x8xf32> to vector<4x8x1xf32>
    %180 = vector.broadcast %179 : vector<4x8x1xf32> to vector<4x8x8xf32>
    %181 = arith.subf %177, %180 : vector<4x8x8xf32>
    %182 = math.exp %181 : vector<4x8x8xf32>
    %cst_55 = arith.constant dense<0.000000e+00> : vector<4x8xf32>
    %183 = vector.multi_reduction <add>, %182, %cst_55 [2] : vector<4x8x8xf32> to vector<4x8xf32>
    %184 = vector.shape_cast %183 : vector<4x8xf32> to vector<4x8x1xf32>
    %185 = tpu.reciprocal %184 {approx = true} : vector<4x8x1xf32> -> vector<4x8x1xf32>
    %186 = vector.broadcast %185 : vector<4x8x1xf32> to vector<4x8x8xf32>
    %187 = arith.mulf %182, %186 : vector<4x8x8xf32>
    %188 = arith.truncf %187 : vector<4x8x8xf32> to vector<4x8x8xbf16>
    %189 = arith.truncf %174 : vector<4x8x8xf32> to vector<4x8x8xbf16>
    "tpu.trace_start"() <{level = 10 : i32, message = "hqk,hkd->hqd"}> : () -> ()
    %cst_56 = arith.constant dense<0.000000e+00> : vector<4x8x8xf32>
    %190 = tpu.matmul %188, %189, %cst_56 {dimension_numbers = #tpu.dot_dimension_numbers<[2], [1], [1], [2], [0, 0, 0, 1, 1, 2], [0], [0]>} : vector<4x8x8xbf16>, vector<4x8x8xbf16>, vector<4x8x8xf32> -> vector<4x8x8xf32>
    "tpu.trace_stop"() : () -> ()
    %191 = vector.extract_strided_slice %190 {offsets = [0, 0, 0], sizes = [1, 8, 8], strides = [1, 1, 1]} : vector<4x8x8xf32> to vector<1x8x8xf32>
    %192 = vector.shape_cast %191 : vector<1x8x8xf32> to vector<8x8xf32>
    %193 = vector.extract_strided_slice %190 {offsets = [1, 0, 0], sizes = [1, 8, 8], strides = [1, 1, 1]} : vector<4x8x8xf32> to vector<1x8x8xf32>
    %194 = vector.shape_cast %193 : vector<1x8x8xf32> to vector<8x8xf32>
    %195 = vector.extract_strided_slice %190 {offsets = [2, 0, 0], sizes = [1, 8, 8], strides = [1, 1, 1]} : vector<4x8x8xf32> to vector<1x8x8xf32>
    %196 = vector.shape_cast %195 : vector<1x8x8xf32> to vector<8x8xf32>
    %197 = vector.extract_strided_slice %190 {offsets = [3, 0, 0], sizes = [1, 8, 8], strides = [1, 1, 1]} : vector<4x8x8xf32> to vector<1x8x8xf32>
    %198 = vector.shape_cast %197 : vector<1x8x8xf32> to vector<8x8xf32>
    %199 = tpu.concatenate %192, %194, %196, %198 in 1 : vector<8x8xf32>, vector<8x8xf32>, vector<8x8xf32>, vector<8x8xf32> -> vector<8x32xf32>
    %200 = arith.truncf %199 : vector<8x32xf32> to vector<8x32xbf16>
    %c1_57 = arith.constant 1 : index
    %c0_58 = arith.constant 0 : index
    %c0_59 = arith.constant 0 : index
    %201 = vector.load %arg3[%c1_57, %c0_58, %c0_59] : memref<2x32x32xbf16, #tpu.memory_space<vmem>>, vector<1x32x32xbf16>
    %202 = vector.shape_cast %201 : vector<1x32x32xbf16> to vector<32x32xbf16>
    %cst_60 = arith.constant dense<0.000000e+00> : vector<8x32xf32>
    %203 = tpu.matmul %200, %202, %cst_60 {dimension_numbers = #tpu.dot_dimension_numbers<[1], [0], [0], [1], [0, 0, 1, 1], [], []>} : vector<8x32xbf16>, vector<32x32xbf16>, vector<8x32xf32> -> vector<8x32xf32>
    %204 = vector.broadcast %135 : vector<1x32xf32> to vector<8x32xf32>
    %205 = arith.addf %203, %204 : vector<8x32xf32>
    %206 = arith.addf %133, %205 : vector<8x32xf32>
    %cst_61 = arith.constant dense<0.000000e+00> : vector<8xf32>
    %207 = vector.multi_reduction <add>, %206, %cst_61 [1] : vector<8x32xf32> to vector<8xf32>
    %208 = vector.shape_cast %207 : vector<8xf32> to vector<8x1xf32>
    %cst_62 = arith.constant 3.200000e+01 : f32
    %209 = vector.broadcast %cst_62 : f32 to vector<8x1xf32>
    %210 = arith.divf %208, %209 : vector<8x1xf32>
    %211 = vector.broadcast %210 : vector<8x1xf32> to vector<8x32xf32>
    %212 = arith.subf %206, %211 : vector<8x32xf32>
    %213 = arith.mulf %212, %212 : vector<8x32xf32>
    %cst_63 = arith.constant dense<0.000000e+00> : vector<8xf32>
    %214 = vector.multi_reduction <add>, %213, %cst_63 [1] : vector<8x32xf32> to vector<8xf32>
    %215 = vector.shape_cast %214 : vector<8xf32> to vector<8x1xf32>
    %cst_64 = arith.constant 3.200000e+01 : f32
    %216 = vector.broadcast %cst_64 : f32 to vector<8x1xf32>
    %217 = arith.divf %215, %216 : vector<8x1xf32>
    %218 = vector.broadcast %210 : vector<8x1xf32> to vector<8x32xf32>
    %219 = arith.subf %206, %218 : vector<8x32xf32>
    %cst_65 = arith.constant 9.99999974E-6 : f32
    %220 = vector.broadcast %cst_65 : f32 to vector<8x1xf32>
    %221 = arith.addf %217, %220 : vector<8x1xf32>
    %222 = math.rsqrt %221 : vector<8x1xf32>
    %223 = vector.broadcast %222 : vector<8x1xf32> to vector<8x32xf32>
    %224 = arith.mulf %219, %223 : vector<8x32xf32>
    %225 = vector.broadcast %138 : vector<1x32xf32> to vector<8x32xf32>
    %226 = arith.mulf %224, %225 : vector<8x32xf32>
    %227 = vector.broadcast %139 : vector<1x32xf32> to vector<8x32xf32>
    %228 = arith.addf %226, %227 : vector<8x32xf32>
    %229 = arith.truncf %228 : vector<8x32xf32> to vector<8x32xbf16>
    %c1_66 = arith.constant 1 : index
    %c0_67 = arith.constant 0 : index
    %c0_68 = arith.constant 0 : index
    %230 = vector.load %arg4[%c1_66, %c0_67, %c0_68] : memref<2x32x64xbf16, #tpu.memory_space<vmem>>, vector<1x32x64xbf16>
    %231 = vector.shape_cast %230 : vector<1x32x64xbf16> to vector<32x64xbf16>
    %cst_69 = arith.constant dense<0.000000e+00> : vector<8x64xf32>
    %232 = tpu.matmul %229, %231, %cst_69 {dimension_numbers = #tpu.dot_dimension_numbers<[1], [0], [0], [1], [0, 0, 1, 1], [], []>} : vector<8x32xbf16>, vector<32x64xbf16>, vector<8x64xf32> -> vector<8x64xf32>
    %233 = vector.broadcast %136 : vector<1x64xf32> to vector<8x64xf32>
    %234 = arith.addf %232, %233 : vector<8x64xf32>
    %cst_70 = arith.constant 0.000000e+00 : f32
    %235 = vector.broadcast %cst_70 : f32 to vector<8x64xf32>
    %236 = arith.maximumf %234, %235 : vector<8x64xf32>
    %237 = arith.truncf %236 : vector<8x64xf32> to vector<8x64xbf16>
    %c1_71 = arith.constant 1 : index
    %c0_72 = arith.constant 0 : index
    %c0_73 = arith.constant 0 : index
    %238 = vector.load %arg5[%c1_71, %c0_72, %c0_73] : memref<2x64x32xbf16, #tpu.memory_space<vmem>>, vector<1x64x32xbf16>
    %239 = vector.shape_cast %238 : vector<1x64x32xbf16> to vector<64x32xbf16>
    %cst_74 = arith.constant dense<0.000000e+00> : vector<8x32xf32>
    %240 = tpu.matmul %237, %239, %cst_74 {dimension_numbers = #tpu.dot_dimension_numbers<[1], [0], [0], [1], [0, 0, 1, 1], [], []>} : vector<8x64xbf16>, vector<64x32xbf16>, vector<8x32xf32> -> vector<8x32xf32>
    %241 = vector.broadcast %137 : vector<1x32xf32> to vector<8x32xf32>
    %242 = arith.addf %240, %241 : vector<8x32xf32>
    %243 = arith.addf %228, %242 : vector<8x32xf32>
    %cst_75 = arith.constant dense<0.000000e+00> : vector<8xf32>
    %244 = vector.multi_reduction <add>, %243, %cst_75 [1] : vector<8x32xf32> to vector<8xf32>
    %245 = vector.shape_cast %244 : vector<8xf32> to vector<8x1xf32>
    %cst_76 = arith.constant 3.200000e+01 : f32
    %246 = vector.broadcast %cst_76 : f32 to vector<8x1xf32>
    %247 = arith.divf %245, %246 : vector<8x1xf32>
    %248 = vector.broadcast %247 : vector<8x1xf32> to vector<8x32xf32>
    %249 = arith.subf %243, %248 : vector<8x32xf32>
    %250 = arith.mulf %249, %249 : vector<8x32xf32>
    %cst_77 = arith.constant dense<0.000000e+00> : vector<8xf32>
    %251 = vector.multi_reduction <add>, %250, %cst_77 [1] : vector<8x32xf32> to vector<8xf32>
    %252 = vector.shape_cast %251 : vector<8xf32> to vector<8x1xf32>
    %cst_78 = arith.constant 3.200000e+01 : f32
    %253 = vector.broadcast %cst_78 : f32 to vector<8x1xf32>
    %254 = arith.divf %252, %253 : vector<8x1xf32>
    %255 = vector.broadcast %247 : vector<8x1xf32> to vector<8x32xf32>
    %256 = arith.subf %243, %255 : vector<8x32xf32>
    %cst_79 = arith.constant 9.99999974E-6 : f32
    %257 = vector.broadcast %cst_79 : f32 to vector<8x1xf32>
    %258 = arith.addf %254, %257 : vector<8x1xf32>
    %259 = math.rsqrt %258 : vector<8x1xf32>
    %260 = vector.broadcast %259 : vector<8x1xf32> to vector<8x32xf32>
    %261 = arith.mulf %256, %260 : vector<8x32xf32>
    %262 = vector.broadcast %140 : vector<1x32xf32> to vector<8x32xf32>
    %263 = arith.mulf %261, %262 : vector<8x32xf32>
    %264 = vector.broadcast %141 : vector<1x32xf32> to vector<8x32xf32>
    %265 = arith.addf %263, %264 : vector<8x32xf32>
    %c16 = arith.constant 16 : index
    %c0_80 = arith.constant 0 : index
    %266 = vector.load %arg9[%c16, %c0_80] : memref<19x128xf32, #tpu.memory_space<vmem>>, vector<1x32xf32>
    %c17 = arith.constant 17 : index
    %c0_81 = arith.constant 0 : index
    %267 = vector.load %arg9[%c17, %c0_81] : memref<19x128xf32, #tpu.memory_space<vmem>>, vector<1x32xf32>
    %c18 = arith.constant 18 : index
    %c0_82 = arith.constant 0 : index
    %268 = vector.load %arg9[%c18, %c0_82] : memref<19x128xf32, #tpu.memory_space<vmem>>, vector<1x128xf32>
    %269 = arith.truncf %265 : vector<8x32xf32> to vector<8x32xbf16>
    %c0_83 = arith.constant 0 : index
    %c0_84 = arith.constant 0 : index
    %270 = vector.load %arg6[%c0_83, %c0_84] : memref<32x32xbf16, #tpu.memory_space<vmem>>, vector<32x32xbf16>
    %cst_85 = arith.constant dense<0.000000e+00> : vector<8x32xf32>
    %271 = tpu.matmul %269, %270, %cst_85 {dimension_numbers = #tpu.dot_dimension_numbers<[1], [0], [0], [1], [0, 0, 1, 1], [], []>} : vector<8x32xbf16>, vector<32x32xbf16>, vector<8x32xf32> -> vector<8x32xf32>
    %272 = vector.broadcast %266 : vector<1x32xf32> to vector<8x32xf32>
    %273 = arith.addf %271, %272 : vector<8x32xf32>
    %cst_86 = arith.constant 0.000000e+00 : f32
    %274 = vector.broadcast %cst_86 : f32 to vector<8x32xf32>
    %275 = arith.maximumf %273, %274 : vector<8x32xf32>
    %276 = arith.truncf %275 : vector<8x32xf32> to vector<8x32xbf16>
    %c0_87 = arith.constant 0 : index
    %c0_88 = arith.constant 0 : index
    %277 = vector.load %arg7[%c0_87, %c0_88] : memref<32x32xbf16, #tpu.memory_space<vmem>>, vector<32x32xbf16>
    %cst_89 = arith.constant dense<0.000000e+00> : vector<8x32xf32>
    %278 = tpu.matmul %276, %277, %cst_89 {dimension_numbers = #tpu.dot_dimension_numbers<[1], [0], [0], [1], [0, 0, 1, 1], [], []>} : vector<8x32xbf16>, vector<32x32xbf16>, vector<8x32xf32> -> vector<8x32xf32>
    %279 = vector.broadcast %267 : vector<1x32xf32> to vector<8x32xf32>
    %280 = arith.addf %278, %279 : vector<8x32xf32>
    %cst_90 = arith.constant 0.000000e+00 : f32
    %281 = vector.broadcast %cst_90 : f32 to vector<8x32xf32>
    %282 = arith.maximumf %280, %281 : vector<8x32xf32>
    %283 = arith.truncf %282 : vector<8x32xf32> to vector<8x32xbf16>
    %c0_91 = arith.constant 0 : index
    %c0_92 = arith.constant 0 : index
    %284 = vector.load %arg8[%c0_91, %c0_92] : memref<32x128xbf16, #tpu.memory_space<vmem>>, vector<32x128xbf16>
    %cst_93 = arith.constant dense<0.000000e+00> : vector<8x128xf32>
    %285 = tpu.matmul %283, %284, %cst_93 {dimension_numbers = #tpu.dot_dimension_numbers<[1], [0], [0], [1], [0, 0, 1, 1], [], []>} : vector<8x32xbf16>, vector<32x128xbf16>, vector<8x128xf32> -> vector<8x128xf32>
    %286 = vector.broadcast %268 : vector<1x128xf32> to vector<8x128xf32>
    %287 = arith.addf %285, %286 : vector<8x128xf32>
    %cst_94 = arith.constant 5.000000e-01 : f32
    %288 = vector.broadcast %cst_94 : f32 to vector<8x128xf32>
    %289 = arith.mulf %288, %287 : vector<8x128xf32>
    %290 = math.tanh %289 : vector<8x128xf32>
    %cst_95 = arith.constant 1.000000e+00 : f32
    %291 = vector.broadcast %cst_95 : f32 to vector<8x128xf32>
    %292 = arith.addf %290, %291 : vector<8x128xf32>
    %cst_96 = arith.constant 5.000000e-01 : f32
    %293 = vector.broadcast %cst_96 : f32 to vector<8x128xf32>
    %294 = arith.mulf %293, %292 : vector<8x128xf32>
    %c0_97 = arith.constant 0 : index
    %c0_98 = arith.constant 0 : index
    %c0_99 = arith.constant 0 : index
    %295 = vector.load %arg10[%c0_97, %c0_98, %c0_99] : memref<1x8x128xf32, #tpu.memory_space<vmem>>, vector<1x8x128xf32>
    %296 = vector.shape_cast %295 : vector<1x8x128xf32> to vector<8x128xf32>
    %297 = vector.shape_cast %294 : vector<8x128xf32> to vector<1x8x128xf32>
    tpu.vector_store %arg10[%c0_97, %c0_98, %c0_99], %297 {strides = array<i32>} : memref<1x8x128xf32, #tpu.memory_space<vmem>>, vector<1x8x128xf32>,
    return
  }
  func.func @transform_0(%arg0: i32) -> (i32, i32, i32) {
    %c0_i32 = arith.constant 0 : i32
    %c0_i32_0 = arith.constant 0 : i32
    %c0_i32_1 = arith.constant 0 : i32
    return %arg0, %c0_i32, %c0_i32_0 : i32, i32, i32
  }
  func.func @transform_1(%arg0: i32) -> (i32, i32, i32) {
    %c0_i32 = arith.constant 0 : i32
    %c0_i32_0 = arith.constant 0 : i32
    %c0_i32_1 = arith.constant 0 : i32
    %c0_i32_2 = arith.constant 0 : i32
    return %c0_i32, %c0_i32_0, %c0_i32_1 : i32, i32, i32
  }
  func.func @transform_2(%arg0: i32) -> (i32, i32, i32) {
    %c0_i32 = arith.constant 0 : i32
    %c0_i32_0 = arith.constant 0 : i32
    %c0_i32_1 = arith.constant 0 : i32
    %c0_i32_2 = arith.constant 0 : i32
    return %c0_i32, %c0_i32_0, %c0_i32_1 : i32, i32, i32
  }
  func.func @transform_3(%arg0: i32) -> (i32, i32, i32) {
    %c0_i32 = arith.constant 0 : i32
    %c0_i32_0 = arith.constant 0 : i32
    %c0_i32_1 = arith.constant 0 : i32
    %c0_i32_2 = arith.constant 0 : i32
    return %c0_i32, %c0_i32_0, %c0_i32_1 : i32, i32, i32
  }
  func.func @transform_4(%arg0: i32) -> (i32, i32, i32) {
    %c0_i32 = arith.constant 0 : i32
    %c0_i32_0 = arith.constant 0 : i32
    %c0_i32_1 = arith.constant 0 : i32
    %c0_i32_2 = arith.constant 0 : i32
    return %c0_i32, %c0_i32_0, %c0_i32_1 : i32, i32, i32
  }
  func.func @transform_5(%arg0: i32) -> (i32, i32) {
    %c0_i32 = arith.constant 0 : i32
    %c0_i32_0 = arith.constant 0 : i32
    %c0_i32_1 = arith.constant 0 : i32
    return %c0_i32, %c0_i32_0 : i32, i32
  }
  func.func @transform_6(%arg0: i32) -> (i32, i32) {
    %c0_i32 = arith.constant 0 : i32
    %c0_i32_0 = arith.constant 0 : i32
    %c0_i32_1 = arith.constant 0 : i32
    return %c0_i32, %c0_i32_0 : i32, i32
  }
  func.func @transform_7(%arg0: i32) -> (i32, i32) {
    %c0_i32 = arith.constant 0 : i32
    %c0_i32_0 = arith.constant 0 : i32
    %c0_i32_1 = arith.constant 0 : i32
    return %c0_i32, %c0_i32_0 : i32, i32
  }
  func.func @transform_8(%arg0: i32) -> (i32, i32) {
    %c0_i32 = arith.constant 0 : i32
    %c0_i32_0 = arith.constant 0 : i32
    %c0_i32_1 = arith.constant 0 : i32
    return %c0_i32, %c0_i32_0 : i32, i32
  }
  func.func @transform_9(%arg0: i32) -> (i32, i32, i32) {
    %c0_i32 = arith.constant 0 : i32
    %c0_i32_0 = arith.constant 0 : i32
    %c0_i32_1 = arith.constant 0 : i32
    return %arg0, %c0_i32, %c0_i32_0 : i32, i32, i32
  }
}

</mosaic_0001>

<llo_original>
// kernel: tpu_custom_call.1
$region0: #{tpu_custom_call.1}
  #allocation0 [shape = 'u32[]', space=smem, size = 0x4, offset = 0x4, fixed_abs, tag = 'smem constant byte address 0x4 - core index']
  #allocation1 [shape = 'u32[144,128]{1,0:T(1,128)}', space=vmem, size = 0x12000, scoped, tag = 'internal scratch']
  %s0 = inlined_call_operand.hbm [shape: f32[2,8,32], index: 0, kind: input, shape index: {}]
  %s1 = inlined_call_operand.vmem [shape: bf16[2,32,96], index: 1, kind: input, shape index: {}]
  %s2 = inlined_call_operand.vmem [shape: bf16[2,32,32], index: 2, kind: input, shape index: {}]
  %s3 = inlined_call_operand.vmem [shape: bf16[2,32,64], index: 3, kind: input, shape index: {}]
  %s4 = inlined_call_operand.vmem [shape: bf16[2,64,32], index: 4, kind: input, shape index: {}]
  %s5 = inlined_call_operand.hbm [shape: bf16[32,32], index: 5, kind: input, shape index: {}]
  %s6 = inlined_call_operand.hbm [shape: bf16[32,32], index: 6, kind: input, shape index: {}]
  %s7 = inlined_call_operand.hbm [shape: bf16[32,128], index: 7, kind: input, shape index: {}]
  %s8 = inlined_call_operand.vmem [shape: f32[19,128], index: 8, kind: input, shape index: {}]
  %s9 = inlined_call_operand.hbm [shape: f32[2,8,128], index: 9, kind: output, shape index: {}]
  %s10 = sld [smem:[#allocation0]]
  $region85: #{tpu_custom_call.1} parent=0
    _
  %s12 = ssub.s32 1, %s10
  %s13 = scalar_select 0, %s12, %s10
  $region1: #{tpu_custom_call.1} parent=0
    #allocation2 [shape = 'u8[8192]{0}', space=vmem, size = 0x2000, scoped, tag = 'input window, operand 0']
    #allocation3 [shape = 's32[2]{0}', space=sflag, size = 0x8, scoped, tag = 'scoped memory for tpu_custom_call.1']
    #allocation4 [shape = 's32[2]{0}', space=sflag, size = 0x8, scoped, tag = 'scoped memory for tpu_custom_call.1']
    #allocation5 [shape = 'u8[8192]{0}', space=vmem, size = 0x2000, scoped, tag = 'input window, operand 5, single buffered']
    #allocation6 [shape = 's32[1]{0}', space=sflag, size = 0x4, scoped, tag = 'scoped memory for tpu_custom_call.1']
    #allocation7 [shape = 'u8[8192]{0}', space=vmem, size = 0x2000, scoped, tag = 'input window, operand 6, single buffered']
    #allocation8 [shape = 'u8[8192]{0}', space=vmem, size = 0x2000, scoped, tag = 'input window, operand 7, single buffered']
    #allocation9 [shape = 's32[1]{0}', space=sflag, size = 0x4, scoped, tag = 'scoped memory for tpu_custom_call.1']
    #allocation10 [shape = 'u8[8192]{0}', space=vmem, size = 0x2000, scoped, tag = 'output window, operand 0']
    %14 = vsyncpa [#allocation3], 0
    %s15 = scalar_lea.sflag [#allocation3], 1
    %16 = vsyncpa %s15, 0
    %17 = vsyncpa [#allocation6], 0
    %18 = vsyncpa [#allocation9], 0
    %19 = vsyncpa [#allocation4], 0
    %s20 = scalar_lea.sflag [#allocation4], 1
    %21 = vsyncpa %s20, 0
    loop: start=0, step=1, limit=4
    $region2: #{tpu_custom_call.1} parent=1 // loop_pre_header
      _
    $region3: #{tpu_custom_call.1} parent=1 // loop_header
      %s23 = sphi 0, %s27
      %p24 = scmp.ge.s32.totalorder %s23, 4
      %s33 = sphi 0, %s35
      %s36 = sphi 0, %s33
      %s37 = sphi 0, %s36
      %s53 = sphi 0, %s37
      %s57 = sphi 0, %s57
      %s59 = sphi 0, %s57
      %s60 = sphi 0, %s59
      %s74 = sphi 0, %s60
      %s78 = sphi 0, %s78
      %s80 = sphi 0, %s78
      %s81 = sphi 0, %s80
      %s95 = sphi 0, %s81
      %s99 = sphi 0, %s99
      %s101 = sphi 0, %s99
      %s102 = sphi 0, %s101
      %s116 = sphi 0, %s102
      %s120 = sphi 0, %s120
      %s122 = sphi 0, %s120
      %s123 = sphi 0, %s122
      %s137 = sphi 0, %s123
      %s141 = sphi 0, %s141
      %s143 = sphi 0, %s141
      %s144 = sphi 0, %s143
      %s158 = sphi 0, %s144
      %s162 = sphi 0, %s162
      %s164 = sphi 0, %s162
      %s165 = sphi 0, %s164
      %s179 = sphi 0, %s165
      %s183 = sphi 0, %s183
      %s185 = sphi 0, %s183
      %s186 = sphi 0, %s185
      %s200 = sphi 0, %s186
      %s204 = sphi 0, %s204
      %s206 = sphi 0, %s204
      %s207 = sphi 0, %s206
      %s221 = sphi 0, %s207
      %s227 = sphi 0, %s229
      %s230 = sphi 0, %s227
      %s231 = sphi 0, %s230
      %s247 = sphi 0, %s231
    $region4: #{tpu_custom_call.1} parent=1 // loop_header_branch
      %26 = sbr.rel (%p24) target = $region8
    $region5: #{tpu_custom_call.1} parent=1 // loop_body
      %s28 = ssub.s32 %s23, 1
      %s29 = ssub.s32 %s23, 2
      %s30 = sadd.s32 %s23, 1
      %s31 = ssub.s32 %s23, %s30
      %p32 = scmp.eq.s32.totalorder %s31, 0
      %s34 = sadd.s32 %s33, 1
      %s35 = scalar_select %p32, %s33, %s34
      %p38 = pneg %p32
      %p39 = scmp.eq.s32.totalorder %s23, 1
      %p40 = por %p38, %p39
      %p41 = scmp.ne.s32.totalorder %s33, %s36
      %p42 = scmp.eq.s32.totalorder %s23, 0
      %p43 = por %p41, %p42
      %p44 = scmp.ne.s32.totalorder %s33, %s36
      %p45 = scmp.eq.s32.totalorder %s28, 1
      %p46 = por %p44, %p45
      %p47 = scmp.ne.s32.totalorder %s36, %s37
      %p48 = scmp.eq.s32.totalorder %s28, 0
      %p49 = por %p47, %p48
      %p50 = scmp.ne.s32.totalorder %s36, %s37
      %p51 = scmp.eq.s32.totalorder %s29, 1
      %p52 = por %p50, %p51
      %p54 = scmp.ne.s32.totalorder %s37, %s53
      %p55 = scmp.eq.s32.totalorder %s29, 0
      %p56 = por %p54, %p55
      %s58 = sadd.s32 %s57, 1
      %p61 = scmp.eq.s32.totalorder %s23, 1
      %p62 = scmp.ne.s32.totalorder %s57, %s59
      %p63 = scmp.eq.s32.totalorder %s23, 0
      %p64 = por %p62, %p63
      %p65 = scmp.ne.s32.totalorder %s57, %s59
      %p66 = scmp.eq.s32.totalorder %s28, 1
      %p67 = por %p65, %p66
      %p68 = scmp.ne.s32.totalorder %s59, %s60
      %p69 = scmp.eq.s32.totalorder %s28, 0
      %p70 = por %p68, %p69
      %p71 = scmp.ne.s32.totalorder %s59, %s60
      %p72 = scmp.eq.s32.totalorder %s29, 1
      %p73 = por %p71, %p72
      %p75 = scmp.ne.s32.totalorder %s60, %s74
      %p76 = scmp.eq.s32.totalorder %s29, 0
      %p77 = por %p75, %p76
      %s79 = sadd.s32 %s78, 1
      %p82 = scmp.eq.s32.totalorder %s23, 1
      %p83 = scmp.ne.s32.totalorder %s78, %s80
      %p84 = scmp.eq.s32.totalorder %s23, 0
      %p85 = por %p83, %p84
      %p86 = scmp.ne.s32.totalorder %s78, %s80
      %p87 = scmp.eq.s32.totalorder %s28, 1
      %p88 = por %p86, %p87
      %p89 = scmp.ne.s32.totalorder %s80, %s81
      %p90 = scmp.eq.s32.totalorder %s28, 0
      %p91 = por %p89, %p90
      %p92 = scmp.ne.s32.totalorder %s80, %s81
      %p93 = scmp.eq.s32.totalorder %s29, 1
      %p94 = por %p92, %p93
      %p96 = scmp.ne.s32.totalorder %s81, %s95
      %p97 = scmp.eq.s32.totalorder %s29, 0
      %p98 = por %p96, %p97
      %s100 = sadd.s32 %s99, 1
      %p103 = scmp.eq.s32.totalorder %s23, 1
      %p104 = scmp.ne.s32.totalorder %s99, %s101
      %p105 = scmp.eq.s32.totalorder %s23, 0
      %p106 = por %p104, %p105
      %p107 = scmp.ne.s32.totalorder %s99, %s101
      %p108 = scmp.eq.s32.totalorder %s28, 1
      %p109 = por %p107, %p108
      %p110 = scmp.ne.s32.totalorder %s101, %s102
      %p111 = scmp.eq.s32.totalorder %s28, 0
      %p112 = por %p110, %p111
      %p113 = scmp.ne.s32.totalorder %s101, %s102
      %p114 = scmp.eq.s32.totalorder %s29, 1
      %p115 = por %p113, %p114
      %p117 = scmp.ne.s32.totalorder %s102, %s116
      %p118 = scmp.eq.s32.totalorder %s29, 0
      %p119 = por %p117, %p118
      %s121 = sadd.s32 %s120, 1
      %p124 = scmp.eq.s32.totalorder %s23, 1
      %p125 = scmp.ne.s32.totalorder %s120, %s122
      %p126 = scmp.eq.s32.totalorder %s23, 0
      %p127 = por %p125, %p126
      %p128 = scmp.ne.s32.totalorder %s120, %s122
      %p129 = scmp.eq.s32.totalorder %s28, 1
      %p130 = por %p128, %p129
      %p131 = scmp.ne.s32.totalorder %s122, %s123
      %p132 = scmp.eq.s32.totalorder %s28, 0
      %p133 = por %p131, %p132
      %p134 = scmp.ne.s32.totalorder %s122, %s123
      %p135 = scmp.eq.s32.totalorder %s29, 1
      %p136 = por %p134, %p135
      %p138 = scmp.ne.s32.totalorder %s123, %s137
      %p139 = scmp.eq.s32.totalorder %s29, 0
      %p140 = por %p138, %p139
      %s142 = sadd.s32 %s141, 1
      %p145 = scmp.eq.s32.totalorder %s23, 1
      %p146 = scmp.ne.s32.totalorder %s141, %s143
      %p147 = scmp.eq.s32.totalorder %s23, 0
      %p148 = por %p146, %p147
      %p149 = scmp.ne.s32.totalorder %s141, %s143
      %p150 = scmp.eq.s32.totalorder %s28, 1
      %p151 = por %p149, %p150
      %p152 = scmp.ne.s32.totalorder %s143, %s144
      %p153 = scmp.eq.s32.totalorder %s28, 0
      %p154 = por %p152, %p153
      %p155 = scmp.ne.s32.totalorder %s143, %s144
      %p156 = scmp.eq.s32.totalorder %s29, 1
      %p157 = por %p155, %p156
      %p159 = scmp.ne.s32.totalorder %s144, %s158
      %p160 = scmp.eq.s32.totalorder %s29, 0
      %p161 = por %p159, %p160
      %s163 = sadd.s32 %s162, 1
      %p166 = scmp.eq.s32.totalorder %s23, 1
      %p167 = scmp.ne.s32.totalorder %s162, %s164
      %p168 = scmp.eq.s32.totalorder %s23, 0
      %p169 = por %p167, %p168
      %p170 = scmp.ne.s32.totalorder %s162, %s164
      %p171 = scmp.eq.s32.totalorder %s28, 1
      %p172 = por %p170, %p171
      %p173 = scmp.ne.s32.totalorder %s164, %s165
      %p174 = scmp.eq.s32.totalorder %s28, 0
      %p175 = por %p173, %p174
      %p176 = scmp.ne.s32.totalorder %s164, %s165
      %p177 = scmp.eq.s32.totalorder %s29, 1
      %p178 = por %p176, %p177
      %p180 = scmp.ne.s32.totalorder %s165, %s179
      %p181 = scmp.eq.s32.totalorder %s29, 0
      %p182 = por %p180, %p181
      %s184 = sadd.s32 %s183, 1
      %p187 = scmp.eq.s32.totalorder %s23, 1
      %p188 = scmp.ne.s32.totalorder %s183, %s185
      %p189 = scmp.eq.s32.totalorder %s23, 0
      %p190 = por %p188, %p189
      %p191 = scmp.ne.s32.totalorder %s183, %s185
      %p192 = scmp.eq.s32.totalorder %s28, 1
      %p193 = por %p191, %p192
      %p194 = scmp.ne.s32.totalorder %s185, %s186
      %p195 = scmp.eq.s32.totalorder %s28, 0
      %p196 = por %p194, %p195
      %p197 = scmp.ne.s32.totalorder %s185, %s186
      %p198 = scmp.eq.s32.totalorder %s29, 1
      %p199 = por %p197, %p198
      %p201 = scmp.ne.s32.totalorder %s186, %s200
      %p202 = scmp.eq.s32.totalorder %s29, 0
      %p203 = por %p201, %p202
      %s205 = sadd.s32 %s204, 1
      %p208 = scmp.eq.s32.totalorder %s23, 1
      %p209 = scmp.ne.s32.totalorder %s204, %s206
      %p210 = scmp.eq.s32.totalorder %s23, 0
      %p211 = por %p209, %p210
      %p212 = scmp.ne.s32.totalorder %s204, %s206
      %p213 = scmp.eq.s32.totalorder %s28, 1
      %p214 = por %p212, %p213
      %p215 = scmp.ne.s32.totalorder %s206, %s207
      %p216 = scmp.eq.s32.totalorder %s28, 0
      %p217 = por %p215, %p216
      %p218 = scmp.ne.s32.totalorder %s206, %s207
      %p219 = scmp.eq.s32.totalorder %s29, 1
      %p220 = por %p218, %p219
      %p222 = scmp.ne.s32.totalorder %s207, %s221
      %p223 = scmp.eq.s32.totalorder %s29, 0
      %p224 = por %p222, %p223
      %s225 = ssub.s32 %s23, %s30
      %p226 = scmp.eq.s32.totalorder %s225, 0
      %s228 = sadd.s32 %s227, 1
      %s229 = scalar_select %p226, %s227, %s228
      %p232 = pneg %p226
      %p233 = scmp.eq.s32.totalorder %s23, 1
      %p234 = por %p232, %p233
      %p235 = scmp.ne.s32.totalorder %s227, %s230
      %p236 = scmp.eq.s32.totalorder %s23, 0
      %p237 = por %p235, %p236
      %p238 = scmp.ne.s32.totalorder %s227, %s230
      %p239 = scmp.eq.s32.totalorder %s28, 1
      %p240 = por %p238, %p239
      %p241 = scmp.ne.s32.totalorder %s230, %s231
      %p242 = scmp.eq.s32.totalorder %s28, 0
      %p243 = por %p241, %p242
      %p244 = scmp.ne.s32.totalorder %s230, %s231
      %p245 = scmp.eq.s32.totalorder %s29, 1
      %p246 = por %p244, %p245
      %p248 = scmp.ne.s32.totalorder %s231, %s247
      %p249 = scmp.eq.s32.totalorder %s29, 0
      %p250 = por %p248, %p249
      %p251 = scmp.le.s32.totalorder 1, %s23
      %p252 = scmp.lt.s32.totalorder %s23, 3
      %p253 = pnand %p251, %p252
      %p254 = pneg %p253
      // Predicated region
      $region9: #{tpu_custom_call.1} parent=5 // pred_check
        _
      $region10: #{tpu_custom_call.1} parent=5 // pred_check_branch
        %256 = sbr.rel (%p253) target = $region12
      $region11: #{tpu_custom_call.1} parent=5 // pred_region
        %s257 = ssub.s32 %s23, 1
        // Predicated region
        $region13: #{tpu_custom_call.1} parent=11 // pred_check
          %p258 = pneg %p70
        $region14: #{tpu_custom_call.1} parent=11 // pred_check_branch
          %260 = sbr.rel (%p258) target = $region16
        $region15: #{tpu_custom_call.1} parent=11 // pred_region
          _
        $region16: #{tpu_custom_call.1} parent=11 // pred_fallthru
          _
        // Predicated region
        $region17: #{tpu_custom_call.1} parent=11 // pred_check
          %p261 = pneg %p91
        $region18: #{tpu_custom_call.1} parent=11 // pred_check_branch
          %263 = sbr.rel (%p261) target = $region20
        $region19: #{tpu_custom_call.1} parent=11 // pred_region
          _
        $region20: #{tpu_custom_call.1} parent=11 // pred_fallthru
          _
        // Predicated region
        $region21: #{tpu_custom_call.1} parent=11 // pred_check
          %p264 = pneg %p112
        $region22: #{tpu_custom_call.1} parent=11 // pred_check_branch
          %266 = sbr.rel (%p264) target = $region24
        $region23: #{tpu_custom_call.1} parent=11 // pred_region
          _
        $region24: #{tpu_custom_call.1} parent=11 // pred_fallthru
          _
        // Predicated region
        $region25: #{tpu_custom_call.1} parent=11 // pred_check
          %p267 = pneg %p133
        $region26: #{tpu_custom_call.1} parent=11 // pred_check_branch
          %269 = sbr.rel (%p267) target = $region28
        $region27: #{tpu_custom_call.1} parent=11 // pred_region
          _
        $region28: #{tpu_custom_call.1} parent=11 // pred_fallthru
          _
        // Predicated region
        $region29: #{tpu_custom_call.1} parent=11 // pred_check
          %p270 = pneg %p154
        $region30: #{tpu_custom_call.1} parent=11 // pred_check_branch
          %272 = sbr.rel (%p270) target = $region32
        $region31: #{tpu_custom_call.1} parent=11 // pred_region
          %s274 = ssub.s32 256, 256
          %275 = vsyncadd [#allocation6], %s274
          %s276 = sshll.u32 [#allocation5], 4
          %s277 = int_to_ptr.vmem [resolvable:$true] %s276
          %282 = dma.hbm_to_vmem [thread:$0]  %s5, 256, %s277, [#allocation6], 64, 64, 4
        $region32: #{tpu_custom_call.1} parent=11 // pred_fallthru
          _
        // Predicated region
        $region33: #{tpu_custom_call.1} parent=11 // pred_check
          %p283 = pneg %p175
        $region34: #{tpu_custom_call.1} parent=11 // pred_check_branch
          %285 = sbr.rel (%p283) target = $region36
        $region35: #{tpu_custom_call.1} parent=11 // pred_region
          %s287 = ssub.s32 256, 256
          %288 = vsyncadd [#allocation6], %s287
          %s289 = sshll.u32 [#allocation7], 4
          %s290 = int_to_ptr.vmem [resolvable:$true] %s289
          %295 = dma.hbm_to_vmem [thread:$0]  %s6, 256, %s290, [#allocation6], 64, 64, 4
        $region36: #{tpu_custom_call.1} parent=11 // pred_fallthru
          _
        // Predicated region
        $region37: #{tpu_custom_call.1} parent=11 // pred_check
          %p296 = pneg %p196
        $region38: #{tpu_custom_call.1} parent=11 // pred_check_branch
          %298 = sbr.rel (%p296) target = $region40
        $region39: #{tpu_custom_call.1} parent=11 // pred_region
          %s300 = ssub.s32 256, 256
          %301 = vsyncadd [#allocation9], %s300
          %s302 = sshll.u32 [#allocation8], 4
          %s303 = int_to_ptr.vmem [resolvable:$true] %s302
          %308 = dma.hbm_to_vmem [thread:$0]  %s7, 256, %s303, [#allocation9], 64, 64, 4
        $region40: #{tpu_custom_call.1} parent=11 // pred_fallthru
          _
        // Predicated region
        $region41: #{tpu_custom_call.1} parent=11 // pred_check
          %p309 = pneg %p217
        $region42: #{tpu_custom_call.1} parent=11 // pred_check_branch
          %311 = sbr.rel (%p309) target = $region44
        $region43: #{tpu_custom_call.1} parent=11 // pred_region
          _
        $region44: #{tpu_custom_call.1} parent=11 // pred_fallthru
          _
      $region12: #{tpu_custom_call.1} parent=5 // pred_fallthru
        _
      %p312 = scmp.lt.s32.totalorder %s23, 2
      // Predicated region
      $region45: #{tpu_custom_call.1} parent=5 // pred_check
        %p313 = pneg %p312
      $region46: #{tpu_custom_call.1} parent=5 // pred_check_branch
        %315 = sbr.rel (%p313) target = $region48
      $region47: #{tpu_custom_call.1} parent=5 // pred_region
        // Predicated region
        $region49: #{tpu_custom_call.1} parent=47 // pred_check
          %p316 = pneg %p43
        $region50: #{tpu_custom_call.1} parent=47 // pred_check_branch
          %318 = sbr.rel (%p316) target = $region52
        $region51: #{tpu_custom_call.1} parent=47 // pred_region
          %s319 = sand.u32 %s33, 1
          %s320 = scalar_lea.sflag [#allocation3], %s319
          %s321 = sand.u32 %s33, 1
          %s322 = smul.addr %s321, 8
          %s323 = scalar_lea.vmem [#allocation2], %s322
          %s325 = ssub.s32 128, 128
          %326 = vsyncadd %s320, %s325
          %s327 = smul.addr %s23, 128
          %s328 = scalar_lea.hbm %s0, %s327
          %s330 = sshll.u32 %s323, 4
          %s331 = int_to_ptr.vmem [resolvable:$true] %s330
          %333 = dma.hbm_to_vmem [thread:$0]  %s328, 128, %s331, %s320
        $region52: #{tpu_custom_call.1} parent=47 // pred_fallthru
          _
      $region48: #{tpu_custom_call.1} parent=5 // pred_fallthru
        _
      %p334 = scmp.le.s32.totalorder 1, %s23
      %p335 = scmp.lt.s32.totalorder %s23, 3
      %p336 = pnand %p334, %p335
      %p337 = pneg %p336
      // Predicated region
      $region53: #{tpu_custom_call.1} parent=5 // pred_check
        _
      $region54: #{tpu_custom_call.1} parent=5 // pred_check_branch
        %339 = sbr.rel (%p336) target = $region56
      $region55: #{tpu_custom_call.1} parent=5 // pred_region
        %s340 = ssub.s32 %s23, 1
        %s341 = sand.u32 %s36, 1
        %s342 = scalar_lea.sflag [#allocation3], %s341
        %s343 = sand.u32 %s36, 1
        %s344 = smul.addr %s343, 8
        %s345 = scalar_lea.vmem [#allocation2], %s344
        // Predicated region
        $region57: #{tpu_custom_call.1} parent=55 // pred_check
          %p346 = pneg %p49
        $region58: #{tpu_custom_call.1} parent=55 // pred_check_branch
          %348 = sbr.rel (%p346) target = $region60
        $region59: #{tpu_custom_call.1} parent=55 // pred_region
          %349 = dma.done %s342, 128
        $region60: #{tpu_custom_call.1} parent=55 // pred_fallthru
          _
        // Predicated region
        $region61: #{tpu_custom_call.1} parent=55 // pred_check
          %p350 = pneg %p154
        $region62: #{tpu_custom_call.1} parent=55 // pred_check_branch
          %352 = sbr.rel (%p350) target = $region64
        $region63: #{tpu_custom_call.1} parent=55 // pred_region
          %353 = dma.done [#allocation6], 256
        $region64: #{tpu_custom_call.1} parent=55 // pred_fallthru
          _
        // Predicated region
        $region65: #{tpu_custom_call.1} parent=55 // pred_check
          %p354 = pneg %p175
        $region66: #{tpu_custom_call.1} parent=55 // pred_check_branch
          %356 = sbr.rel (%p354) target = $region68
        $region67: #{tpu_custom_call.1} parent=55 // pred_region
          %357 = dma.done [#allocation6], 256
        $region68: #{tpu_custom_call.1} parent=55 // pred_fallthru
          _
        // Predicated region
        $region69: #{tpu_custom_call.1} parent=55 // pred_check
          %p358 = pneg %p196
        $region70: #{tpu_custom_call.1} parent=55 // pred_check_branch
          %360 = sbr.rel (%p358) target = $region72
        $region71: #{tpu_custom_call.1} parent=55 // pred_region
          %361 = dma.done [#allocation9], 256
        $region72: #{tpu_custom_call.1} parent=55 // pred_fallthru
          _
        %s362 = sand.u32 %s36, 1
        %s363 = scalar_lea.sflag [#allocation3], %s362
        %s364 = sand.u32 %s36, 1
        %s365 = smul.addr %s364, 8
        %s366 = scalar_lea.vmem [#allocation2], %s365
        %p367 = pneg %p49
        %p368 = pneg %p46
        %p369 = pneg %p70
        %p370 = pneg %p67
        %p371 = pneg %p91
        %p372 = pneg %p88
        %p373 = pneg %p112
        %p374 = pneg %p109
        %p375 = pneg %p133
        %p376 = pneg %p130
        %p377 = pneg %p154
        %p378 = pneg %p151
        %p379 = pneg %p175
        %p380 = pneg %p172
        %p381 = pneg %p196
        %p382 = pneg %p193
        %p383 = pneg %p217
        %p384 = pneg %p214
        %p385 = pneg %p243
        %p386 = pneg %p240
        %s387 = sand.u32 %s230, 1
        %s388 = scalar_lea.sflag [#allocation4], %s387
        %s389 = sand.u32 %s230, 1
        %s390 = smul.addr %s389, 8
        %s391 = scalar_lea.vmem [#allocation10], %s390
        %v393 = vld [vmem:[%s345] sm:$0xff]
        %v394 = vld [vmem:[%s8] sm:$0x1]
        %v395 = vld [vmem:[%s8 + $0x1] sm:$0x1]
        %v396 = vld [vmem:[%s8 + $0x2] sm:$0x1]
        %v397 = vld [vmem:[%s8 + $0x3] sm:$0x1]
        %v398 = vld [vmem:[%s8 + $0x4] sm:$0x1]
        %v399 = vld [vmem:[%s8 + $0x5] sm:$0x1]
        %v400 = vld [vmem:[%s8 + $0x6] sm:$0x1]
        %v401 = vld [vmem:[%s8 + $0x7] sm:$0x1]
        %v402 = vpack.c.bf16 %v393, %v393
        %v403 = vld [vmem:[%s1] sm:$0xf]
        %v404 = vld [vmem:[%s1 + $0x4] sm:$0xf]
        %v405 = vld [vmem:[%s1 + $0x8] sm:$0xf]
        %v406 = vld [vmem:[%s1 + $0xc] sm:$0xf]
        %v407 = vlaneseq
        %v408 = vshrl.u32 %v407, 7
        %v409 = vsub.s32 0, %v408
        %v410 = vrot.slane %v394, %v409
        %v415 = vunpack.c.l.b16 %v403
        %v416 = vunpack.c.l.b16 %v404
        %v417 = vunpack.c.l.b16 %v405
        %v418 = vunpack.c.l.b16 %v406
        %v419 = vpack.c.b16 %v416, %v415
        %v420 = vpack.c.b16 %v418, %v417
        %vm423 = vcmask 261120
        %v425 = vsel %vm423, %v402, 0
        %427 = vmatprep.subr.bf16.mxu0 0
        %428 = vmatpush1.bf16.msra.mxu0 %v419
        %429 = vmatprep.subr.bf16.mxu0 0
        %430 = vmatpush1.bf16.msra.mxu0 %v420
        %431 = vmatprep.subr.bf16.mxu0 0
        %432 = vmatpush1.bf16.msra.mxu0 0
        %433 = vmatprep.subr.bf16.mxu0 0
        %434 = vmatpush1.bf16.msra.mxu0 0
        %435 = vmatprep.subr.bf16.mxu0 0
        %436 = vmatpush1.bf16.msra.mxu0 0
        %437 = vmatprep.subr.bf16.mxu0 0
        %438 = vmatpush1.bf16.msra.mxu0 0
        %439 = vmatprep.subr.bf16.mxu0 0
        %440 = vmatpush1.bf16.msra.mxu0 0
        %441 = vmatprep.subr.bf16.mxu0 0
        %442 = vmatpush1.bf16.msra.mxu0 0
        %443 = vmatprep.subr.bf16.mxu0 0
        %444 = vmatpush1.bf16.msra.mxu0 0
        %445 = vmatprep.subr.bf16.mxu0 0
        %446 = vmatpush1.bf16.msra.mxu0 0
        %447 = vmatprep.subr.bf16.mxu0 0
        %448 = vmatpush1.bf16.msra.mxu0 0
        %449 = vmatprep.subr.bf16.mxu0 0
        %450 = vmatpush1.bf16.msra.mxu0 0
        %451 = vmatprep.subr.bf16.mxu0 0
        %452 = vmatpush1.bf16.msra.mxu0 0
        %453 = vmatprep.subr.bf16.mxu0 0
        %454 = vmatpush1.bf16.msra.mxu0 0
        %455 = vmatprep.subr.bf16.mxu0 0
        %456 = vmatpush1.bf16.msra.mxu0 0
        %457 = vmatprep.subr.bf16.mxu0 0
        %458 = vmatpush1.bf16.msra.mxu0 0
        %459 = vmatprep.mubr.bf16.mxu0 0
        %460 = vmatmul.mubr.bf16.gmra.mrb[0].mxu0 %v425
        %v461 = vpop.f32.mrb[0].mxu0
        %v462 = vadd.f32 %v410, %v461
        %v463 = vpop.f32.mrb[0].mxu0
        %v464 = vpop.f32.mrb[0].mxu0
        %v465 = vpop.f32.mrb[0].mxu0
        %466 = vdwg.mxu0
        %468 = vrot.lane.b32.xlu0 %v462, 120
        %v469 = vpop.permute.xlu0 %468
        %471 = vrot.lane.b32.xlu0 %v462, 112
        %v472 = vpop.permute.xlu0 %471
        %474 = vrot.lane.b32.xlu0 %v462, 104
        %v475 = vpop.permute.xlu0 %474
        %v477 = vpack.c.bf16 %v462, %v462
        %v478 = vpack.c.bf16 %v469, %v469
        %v479 = vpack.c.bf16 %v472, %v472
        %v480 = vpack.c.bf16 %v475, %v475
        %482 = vrot.lane.b32.xlu0 %v477, 96
        %v483 = vpop.permute.xlu0 %482
        %vm484 = vcmask 64512
        %v486 = vsel %vm484, %v477, 0
        %v489 = vsel %vm484, %v483, 0
        %491 = vmatprep.subr.bf16.mxu0 0
        %492 = vmatpush1.bf16.xpose.msra.mxu0 %v489
        %493 = vmatprep.subr.bf16.mxu0 0
        %494 = vmatpush1.bf16.xpose.msra.mxu0 0
        %495 = vmatprep.subr.bf16.mxu0 0
        %496 = vmatpush1.bf16.xpose.msra.mxu0 0
        %497 = vmatprep.subr.bf16.mxu0 0
        %498 = vmatpush1.bf16.xpose.msra.mxu0 0
        %499 = vmatprep.subr.bf16.mxu0 0
        %500 = vmatpush1.bf16.xpose.msra.mxu0 0
        %501 = vmatprep.subr.bf16.mxu0 0
        %502 = vmatpush1.bf16.xpose.msra.mxu0 0
        %503 = vmatprep.subr.bf16.mxu0 0
        %504 = vmatpush1.bf16.xpose.msra.mxu0 0
        %505 = vmatprep.subr.bf16.mxu0 0
        %506 = vmatpush1.bf16.xpose.msra.mxu0 0
        %507 = vmatprep.subr.bf16.mxu0 0
        %508 = vmatpush1.bf16.xpose.msra.mxu0 0
        %509 = vmatprep.subr.bf16.mxu0 0
        %510 = vmatpush1.bf16.xpose.msra.mxu0 0
        %511 = vmatprep.subr.bf16.mxu0 0
        %512 = vmatpush1.bf16.xpose.msra.mxu0 0
        %513 = vmatprep.subr.bf16.mxu0 0
        %514 = vmatpush1.bf16.xpose.msra.mxu0 0
        %515 = vmatprep.subr.bf16.mxu0 0
        %516 = vmatpush1.bf16.xpose.msra.mxu0 0
        %517 = vmatprep.subr.bf16.mxu0 0
        %518 = vmatpush1.bf16.xpose.msra.mxu0 0
        %519 = vmatprep.subr.bf16.mxu0 0
        %520 = vmatpush1.bf16.xpose.msra.mxu0 0
        %521 = vmatprep.subr.bf16.mxu0 0
        %522 = vmatpush1.bf16.xpose.msra.mxu0 0
        %523 = vmatprep.mubr.bf16.mxu0 0
        %524 = vmatmul.mubr.bf16.gmra.mrb[0].mxu0 %v486
        %v525 = vpop.f32.mrb[0].mxu0
        %v526 = vadd.f32 0.0, %v525
        %v527 = vpop.f32.mrb[0].mxu0
        %v528 = vpop.f32.mrb[0].mxu0
        %v529 = vpop.f32.mrb[0].mxu0
        %530 = vdwg.mxu0
        %532 = vrot.lane.b32.xlu0 %v478, 96
        %v533 = vpop.permute.xlu0 %532
        %v535 = vsel %vm484, %v478, 0
        %v538 = vsel %vm484, %v533, 0
        %540 = vmatprep.subr.bf16.mxu0 0
        %541 = vmatpush1.bf16.xpose.msra.mxu0 %v538
        %542 = vmatprep.subr.bf16.mxu0 0
        %543 = vmatpush1.bf16.xpose.msra.mxu0 0
        %544 = vmatprep.subr.bf16.mxu0 0
        %545 = vmatpush1.bf16.xpose.msra.mxu0 0
        %546 = vmatprep.subr.bf16.mxu0 0
        %547 = vmatpush1.bf16.xpose.msra.mxu0 0
        %548 = vmatprep.subr.bf16.mxu0 0
        %549 = vmatpush1.bf16.xpose.msra.mxu0 0
        %550 = vmatprep.subr.bf16.mxu0 0
        %551 = vmatpush1.bf16.xpose.msra.mxu0 0
        %552 = vmatprep.subr.bf16.mxu0 0
        %553 = vmatpush1.bf16.xpose.msra.mxu0 0
        %554 = vmatprep.subr.bf16.mxu0 0
        %555 = vmatpush1.bf16.xpose.msra.mxu0 0
        %556 = vmatprep.subr.bf16.mxu0 0
        %557 = vmatpush1.bf16.xpose.msra.mxu0 0
        %558 = vmatprep.subr.bf16.mxu0 0
        %559 = vmatpush1.bf16.xpose.msra.mxu0 0
        %560 = vmatprep.subr.bf16.mxu0 0
        %561 = vmatpush1.bf16.xpose.msra.mxu0 0
        %562 = vmatprep.subr.bf16.mxu0 0
        %563 = vmatpush1.bf16.xpose.msra.mxu0 0
        %564 = vmatprep.subr.bf16.mxu0 0
        %565 = vmatpush1.bf16.xpose.msra.mxu0 0
        %566 = vmatprep.subr.bf16.mxu0 0
        %567 = vmatpush1.bf16.xpose.msra.mxu0 0
        %568 = vmatprep.subr.bf16.mxu0 0
        %569 = vmatpush1.bf16.xpose.msra.mxu0 0
        %570 = vmatprep.subr.bf16.mxu0 0
        %571 = vmatpush1.bf16.xpose.msra.mxu0 0
        %572 = vmatprep.mubr.bf16.mxu0 0
        %573 = vmatmul.mubr.bf16.gmra.mrb[0].mxu0 %v535
        %v574 = vpop.f32.mrb[0].mxu0
        %v575 = vadd.f32 0.0, %v574
        %v576 = vpop.f32.mrb[0].mxu0
        %v577 = vpop.f32.mrb[0].mxu0
        %v578 = vpop.f32.mrb[0].mxu0
        %579 = vdwg.mxu0
        %581 = vrot.lane.b32.xlu0 %v479, 96
        %v582 = vpop.permute.xlu0 %581
        %v584 = vsel %vm484, %v479, 0
        %v587 = vsel %vm484, %v582, 0
        %589 = vmatprep.subr.bf16.mxu0 0
        %590 = vmatpush1.bf16.xpose.msra.mxu0 %v587
        %591 = vmatprep.subr.bf16.mxu0 0
        %592 = vmatpush1.bf16.xpose.msra.mxu0 0
        %593 = vmatprep.subr.bf16.mxu0 0
        %594 = vmatpush1.bf16.xpose.msra.mxu0 0
        %595 = vmatprep.subr.bf16.mxu0 0
        %596 = vmatpush1.bf16.xpose.msra.mxu0 0
        %597 = vmatprep.subr.bf16.mxu0 0
        %598 = vmatpush1.bf16.xpose.msra.mxu0 0
        %599 = vmatprep.subr.bf16.mxu0 0
        %600 = vmatpush1.bf16.xpose.msra.mxu0 0
        %601 = vmatprep.subr.bf16.mxu0 0
        %602 = vmatpush1.bf16.xpose.msra.mxu0 0
        %603 = vmatprep.subr.bf16.mxu0 0
        %604 = vmatpush1.bf16.xpose.msra.mxu0 0
        %605 = vmatprep.subr.bf16.mxu0 0
        %606 = vmatpush1.bf16.xpose.msra.mxu0 0
        %607 = vmatprep.subr.bf16.mxu0 0
        %608 = vmatpush1.bf16.xpose.msra.mxu0 0
        %609 = vmatprep.subr.bf16.mxu0 0
        %610 = vmatpush1.bf16.xpose.msra.mxu0 0
        %611 = vmatprep.subr.bf16.mxu0 0
        %612 = vmatpush1.bf16.xpose.msra.mxu0 0
        %613 = vmatprep.subr.bf16.mxu0 0
        %614 = vmatpush1.bf16.xpose.msra.mxu0 0
        %615 = vmatprep.subr.bf16.mxu0 0
        %616 = vmatpush1.bf16.xpose.msra.mxu0 0
        %617 = vmatprep.subr.bf16.mxu0 0
        %618 = vmatpush1.bf16.xpose.msra.mxu0 0
        %619 = vmatprep.subr.bf16.mxu0 0
        %620 = vmatpush1.bf16.xpose.msra.mxu0 0
        %621 = vmatprep.mubr.bf16.mxu0 0
        %622 = vmatmul.mubr.bf16.gmra.mrb[0].mxu0 %v584
        %v623 = vpop.f32.mrb[0].mxu0
        %v624 = vadd.f32 0.0, %v623
        %v625 = vpop.f32.mrb[0].mxu0
        %v626 = vpop.f32.mrb[0].mxu0
        %v627 = vpop.f32.mrb[0].mxu0
        %628 = vdwg.mxu0
        %630 = vrot.lane.b32.xlu0 %v480, 96
        %v631 = vpop.permute.xlu0 %630
        %v633 = vsel %vm484, %v480, 0
        %v636 = vsel %vm484, %v631, 0
        %638 = vmatprep.subr.bf16.mxu0 0
        %639 = vmatpush1.bf16.xpose.msra.mxu0 %v636
        %640 = vmatprep.subr.bf16.mxu0 0
        %641 = vmatpush1.bf16.xpose.msra.mxu0 0
        %642 = vmatprep.subr.bf16.mxu0 0
        %643 = vmatpush1.bf16.xpose.msra.mxu0 0
        %644 = vmatprep.subr.bf16.mxu0 0
        %645 = vmatpush1.bf16.xpose.msra.mxu0 0
        %646 = vmatprep.subr.bf16.mxu0 0
        %647 = vmatpush1.bf16.xpose.msra.mxu0 0
        %648 = vmatprep.subr.bf16.mxu0 0
        %649 = vmatpush1.bf16.xpose.msra.mxu0 0
        %650 = vmatprep.subr.bf16.mxu0 0
        %651 = vmatpush1.bf16.xpose.msra.mxu0 0
        %652 = vmatprep.subr.bf16.mxu0 0
        %653 = vmatpush1.bf16.xpose.msra.mxu0 0
        %654 = vmatprep.subr.bf16.mxu0 0
        %655 = vmatpush1.bf16.xpose.msra.mxu0 0
        %656 = vmatprep.subr.bf16.mxu0 0
        %657 = vmatpush1.bf16.xpose.msra.mxu0 0
        %658 = vmatprep.subr.bf16.mxu0 0
        %659 = vmatpush1.bf16.xpose.msra.mxu0 0
        %660 = vmatprep.subr.bf16.mxu0 0
        %661 = vmatpush1.bf16.xpose.msra.mxu0 0
        %662 = vmatprep.subr.bf16.mxu0 0
        %663 = vmatpush1.bf16.xpose.msra.mxu0 0
        %664 = vmatprep.subr.bf16.mxu0 0
        %665 = vmatpush1.bf16.xpose.msra.mxu0 0
        %666 = vmatprep.subr.bf16.mxu0 0
        %667 = vmatpush1.bf16.xpose.msra.mxu0 0
        %668 = vmatprep.subr.bf16.mxu0 0
        %669 = vmatpush1.bf16.xpose.msra.mxu0 0
        %670 = vmatprep.mubr.bf16.mxu0 0
        %671 = vmatmul.mubr.bf16.gmra.mrb[0].mxu0 %v633
        %v672 = vpop.f32.mrb[0].mxu0
        %v673 = vadd.f32 0.0, %v672
        %v674 = vpop.f32.mrb[0].mxu0
        %v675 = vpop.f32.mrb[0].mxu0
        %v676 = vpop.f32.mrb[0].mxu0
        %677 = vdwg.mxu0
        %v678 = vsel %vm484, %v526, -inf
        %679 = vmax.xlane.f32.xlu0 %v678
        %v680 = vpop.xlane.xlu0 %679
        %v681 = vsel %vm484, %v575, -inf
        %682 = vmax.xlane.f32.xlu0 %v681
        %v683 = vpop.xlane.xlu0 %682
        %v684 = vsel %vm484, %v624, -inf
        %685 = vmax.xlane.f32.xlu0 %v684
        %v686 = vpop.xlane.xlu0 %685
        %v687 = vsel %vm484, %v673, -inf
        %688 = vmax.xlane.f32.xlu0 %v687
        %v689 = vpop.xlane.xlu0 %688
        %v690 = vsub.f32 %v526, %v680
        %v691 = vsub.f32 %v575, %v683
        %v692 = vsub.f32 %v624, %v686
        %v693 = vsub.f32 %v673, %v689
        %v694 = vmul.f32 %v690, 1.442695
        %v695 = vpow.pop %v694
        %v696 = vmul.f32 %v691, 1.442695
        %v697 = vpow.pop %v696
        %v698 = vmul.f32 %v692, 1.442695
        %v699 = vpow.pop %v698
        %v700 = vmul.f32 %v693, 1.442695
        %v701 = vpow.pop %v700
        %v702 = vsel %vm484, %v695, 0.0
        %703 = vadd.xlane.f32.xlu0 %v702
        %v704 = vpop.xlane.xlu0 %703
        %v705 = vsel %vm484, %v697, 0.0
        %706 = vadd.xlane.f32.xlu0 %v705
        %v707 = vpop.xlane.xlu0 %706
        %v708 = vsel %vm484, %v699, 0.0
        %709 = vadd.xlane.f32.xlu0 %v708
        %v710 = vpop.xlane.xlu0 %709
        %v711 = vsel %vm484, %v701, 0.0
        %712 = vadd.xlane.f32.xlu0 %v711
        %v713 = vpop.xlane.xlu0 %712
        %v714 = vrcp.pop %v704
        %v715 = vrcp.pop %v707
        %v716 = vrcp.pop %v710
        %v717 = vrcp.pop %v713
        %v718 = vmul.f32 %v695, %v714
        %v719 = vmul.f32 %v697, %v715
        %v720 = vmul.f32 %v699, %v716
        %v721 = vmul.f32 %v701, %v717
        %v722 = vpack.c.bf16 %v718, %v718
        %v723 = vpack.c.bf16 %v719, %v719
        %v724 = vpack.c.bf16 %v720, %v720
        %v725 = vpack.c.bf16 %v721, %v721
        %726 = vrot.lane.b32.xlu0 %v477, 64
        %v727 = vpop.permute.xlu0 %726
        %v729 = vsel %vm484, %v722, 0
        %vm731 = vcmask 1043456
        %v733 = vsel %vm731, %v727, 0
        %735 = vmatprep.subr.bf16.mxu0 0
        %736 = vmatpush1.bf16.msra.mxu0 %v733
        %737 = vmatprep.subr.bf16.mxu0 0
        %738 = vmatpush1.bf16.msra.mxu0 0
        %739 = vmatprep.subr.bf16.mxu0 0
        %740 = vmatpush1.bf16.msra.mxu0 0
        %741 = vmatprep.subr.bf16.mxu0 0
        %742 = vmatpush1.bf16.msra.mxu0 0
        %743 = vmatprep.subr.bf16.mxu0 0
        %744 = vmatpush1.bf16.msra.mxu0 0
        %745 = vmatprep.subr.bf16.mxu0 0
        %746 = vmatpush1.bf16.msra.mxu0 0
        %747 = vmatprep.subr.bf16.mxu0 0
        %748 = vmatpush1.bf16.msra.mxu0 0
        %749 = vmatprep.subr.bf16.mxu0 0
        %750 = vmatpush1.bf16.msra.mxu0 0
        %751 = vmatprep.subr.bf16.mxu0 0
        %752 = vmatpush1.bf16.msra.mxu0 0
        %753 = vmatprep.subr.bf16.mxu0 0
        %754 = vmatpush1.bf16.msra.mxu0 0
        %755 = vmatprep.subr.bf16.mxu0 0
        %756 = vmatpush1.bf16.msra.mxu0 0
        %757 = vmatprep.subr.bf16.mxu0 0
        %758 = vmatpush1.bf16.msra.mxu0 0
        %759 = vmatprep.subr.bf16.mxu0 0
        %760 = vmatpush1.bf16.msra.mxu0 0
        %761 = vmatprep.subr.bf16.mxu0 0
        %762 = vmatpush1.bf16.msra.mxu0 0
        %763 = vmatprep.subr.bf16.mxu0 0
        %764 = vmatpush1.bf16.msra.mxu0 0
        %765 = vmatprep.subr.bf16.mxu0 0
        %766 = vmatpush1.bf16.msra.mxu0 0
        %767 = vmatprep.mubr.bf16.mxu0 0
        %768 = vmatmul.mubr.bf16.gmra.mrb[0].mxu0 %v729
        %v769 = vpop.f32.mrb[0].mxu0
        %v770 = vadd.f32 0.0, %v769
        %v771 = vpop.f32.mrb[0].mxu0
        %v772 = vpop.f32.mrb[0].mxu0
        %v773 = vpop.f32.mrb[0].mxu0
        %774 = vdwg.mxu0
        %775 = vrot.lane.b32.xlu0 %v478, 64
        %v776 = vpop.permute.xlu0 %775
        %v778 = vsel %vm484, %v723, 0
        %v781 = vsel %vm731, %v776, 0
        %783 = vmatprep.subr.bf16.mxu0 0
        %784 = vmatpush1.bf16.msra.mxu0 %v781
        %785 = vmatprep.subr.bf16.mxu0 0
        %786 = vmatpush1.bf16.msra.mxu0 0
        %787 = vmatprep.subr.bf16.mxu0 0
        %788 = vmatpush1.bf16.msra.mxu0 0
        %789 = vmatprep.subr.bf16.mxu0 0
        %790 = vmatpush1.bf16.msra.mxu0 0
        %791 = vmatprep.subr.bf16.mxu0 0
        %792 = vmatpush1.bf16.msra.mxu0 0
        %793 = vmatprep.subr.bf16.mxu0 0
        %794 = vmatpush1.bf16.msra.mxu0 0
        %795 = vmatprep.subr.bf16.mxu0 0
        %796 = vmatpush1.bf16.msra.mxu0 0
        %797 = vmatprep.subr.bf16.mxu0 0
        %798 = vmatpush1.bf16.msra.mxu0 0
        %799 = vmatprep.subr.bf16.mxu0 0
        %800 = vmatpush1.bf16.msra.mxu0 0
        %801 = vmatprep.subr.bf16.mxu0 0
        %802 = vmatpush1.bf16.msra.mxu0 0
        %803 = vmatprep.subr.bf16.mxu0 0
        %804 = vmatpush1.bf16.msra.mxu0 0
        %805 = vmatprep.subr.bf16.mxu0 0
        %806 = vmatpush1.bf16.msra.mxu0 0
        %807 = vmatprep.subr.bf16.mxu0 0
        %808 = vmatpush1.bf16.msra.mxu0 0
        %809 = vmatprep.subr.bf16.mxu0 0
        %810 = vmatpush1.bf16.msra.mxu0 0
        %811 = vmatprep.subr.bf16.mxu0 0
        %812 = vmatpush1.bf16.msra.mxu0 0
        %813 = vmatprep.subr.bf16.mxu0 0
        %814 = vmatpush1.bf16.msra.mxu0 0
        %815 = vmatprep.mubr.bf16.mxu0 0
        %816 = vmatmul.mubr.bf16.gmra.mrb[0].mxu0 %v778
        %v817 = vpop.f32.mrb[0].mxu0
        %v818 = vadd.f32 0.0, %v817
        %v819 = vpop.f32.mrb[0].mxu0
        %v820 = vpop.f32.mrb[0].mxu0
        %v821 = vpop.f32.mrb[0].mxu0
        %822 = vdwg.mxu0
        %823 = vrot.lane.b32.xlu0 %v479, 64
        %v824 = vpop.permute.xlu0 %823
        %v826 = vsel %vm484, %v724, 0
        %v829 = vsel %vm731, %v824, 0
        %831 = vmatprep.subr.bf16.mxu0 0
        %832 = vmatpush1.bf16.msra.mxu0 %v829
        %833 = vmatprep.subr.bf16.mxu0 0
        %834 = vmatpush1.bf16.msra.mxu0 0
        %835 = vmatprep.subr.bf16.mxu0 0
        %836 = vmatpush1.bf16.msra.mxu0 0
        %837 = vmatprep.subr.bf16.mxu0 0
        %838 = vmatpush1.bf16.msra.mxu0 0
        %839 = vmatprep.subr.bf16.mxu0 0
        %840 = vmatpush1.bf16.msra.mxu0 0
        %841 = vmatprep.subr.bf16.mxu0 0
        %842 = vmatpush1.bf16.msra.mxu0 0
        %843 = vmatprep.subr.bf16.mxu0 0
        %844 = vmatpush1.bf16.msra.mxu0 0
        %845 = vmatprep.subr.bf16.mxu0 0
        %846 = vmatpush1.bf16.msra.mxu0 0
        %847 = vmatprep.subr.bf16.mxu0 0
        %848 = vmatpush1.bf16.msra.mxu0 0
        %849 = vmatprep.subr.bf16.mxu0 0
        %850 = vmatpush1.bf16.msra.mxu0 0
        %851 = vmatprep.subr.bf16.mxu0 0
        %852 = vmatpush1.bf16.msra.mxu0 0
        %853 = vmatprep.subr.bf16.mxu0 0
        %854 = vmatpush1.bf16.msra.mxu0 0
        %855 = vmatprep.subr.bf16.mxu0 0
        %856 = vmatpush1.bf16.msra.mxu0 0
        %857 = vmatprep.subr.bf16.mxu0 0
        %858 = vmatpush1.bf16.msra.mxu0 0
        %859 = vmatprep.subr.bf16.mxu0 0
        %860 = vmatpush1.bf16.msra.mxu0 0
        %861 = vmatprep.subr.bf16.mxu0 0
        %862 = vmatpush1.bf16.msra.mxu0 0
        %863 = vmatprep.mubr.bf16.mxu0 0
        %864 = vmatmul.mubr.bf16.gmra.mrb[0].mxu0 %v826
        %v865 = vpop.f32.mrb[0].mxu0
        %v866 = vadd.f32 0.0, %v865
        %v867 = vpop.f32.mrb[0].mxu0
        %v868 = vpop.f32.mrb[0].mxu0
        %v869 = vpop.f32.mrb[0].mxu0
        %870 = vdwg.mxu0
        %871 = vrot.lane.b32.xlu0 %v480, 64
        %v872 = vpop.permute.xlu0 %871
        %v874 = vsel %vm484, %v725, 0
        %v877 = vsel %vm731, %v872, 0
        %879 = vmatprep.subr.bf16.mxu0 0
        %880 = vmatpush1.bf16.msra.mxu0 %v877
        %881 = vmatprep.subr.bf16.mxu0 0
        %882 = vmatpush1.bf16.msra.mxu0 0
        %883 = vmatprep.subr.bf16.mxu0 0
        %884 = vmatpush1.bf16.msra.mxu0 0
        %885 = vmatprep.subr.bf16.mxu0 0
        %886 = vmatpush1.bf16.msra.mxu0 0
        %887 = vmatprep.subr.bf16.mxu0 0
        %888 = vmatpush1.bf16.msra.mxu0 0
        %889 = vmatprep.subr.bf16.mxu0 0
        %890 = vmatpush1.bf16.msra.mxu0 0
        %891 = vmatprep.subr.bf16.mxu0 0
        %892 = vmatpush1.bf16.msra.mxu0 0
        %893 = vmatprep.subr.bf16.mxu0 0
        %894 = vmatpush1.bf16.msra.mxu0 0
        %895 = vmatprep.subr.bf16.mxu0 0
        %896 = vmatpush1.bf16.msra.mxu0 0
        %897 = vmatprep.subr.bf16.mxu0 0
        %898 = vmatpush1.bf16.msra.mxu0 0
        %899 = vmatprep.subr.bf16.mxu0 0
        %900 = vmatpush1.bf16.msra.mxu0 0
        %901 = vmatprep.subr.bf16.mxu0 0
        %902 = vmatpush1.bf16.msra.mxu0 0
        %903 = vmatprep.subr.bf16.mxu0 0
        %904 = vmatpush1.bf16.msra.mxu0 0
        %905 = vmatprep.subr.bf16.mxu0 0
        %906 = vmatpush1.bf16.msra.mxu0 0
        %907 = vmatprep.subr.bf16.mxu0 0
        %908 = vmatpush1.bf16.msra.mxu0 0
        %909 = vmatprep.subr.bf16.mxu0 0
        %910 = vmatpush1.bf16.msra.mxu0 0
        %911 = vmatprep.mubr.bf16.mxu0 0
        %912 = vmatmul.mubr.bf16.gmra.mrb[0].mxu0 %v874
        %v913 = vpop.f32.mrb[0].mxu0
        %v914 = vadd.f32 0.0, %v913
        %v915 = vpop.f32.mrb[0].mxu0
        %v916 = vpop.f32.mrb[0].mxu0
        %v917 = vpop.f32.mrb[0].mxu0
        %918 = vdwg.mxu0
        %920 = vrot.lane.b32.xlu0 %v818, 8
        %v921 = vpop.permute.xlu0 %920
        %924 = vrot.lane.b32.xlu0 %v866, 16
        %v925 = vpop.permute.xlu0 %924
        %928 = vrot.lane.b32.xlu0 %v914, 24
        %v929 = vpop.permute.xlu0 %928
        %v931 = vsel %vm484, %v770, %v921
        %vm932 = vcmask 130048
        %v933 = vsel %vm932, %v931, %v925
        %vm934 = vcmask 195584
        %v935 = vsel %vm934, %v933, %v929
        %v936 = vpack.c.bf16 %v935, %v935
        %v937 = vld [vmem:[%s2] sm:$0xf]
        %v938 = vld [vmem:[%s2 + $0x4] sm:$0xf]
        %v939 = vld [vmem:[%s2 + $0x8] sm:$0xf]
        %v940 = vld [vmem:[%s2 + $0xc] sm:$0xf]
        %v941 = vlaneseq
        %v942 = vshrl.u32 %v941, 7
        %v943 = vsub.s32 0, %v942
        %v944 = vrot.slane %v395, %v943
        %v949 = vunpack.c.l.b16 %v937
        %v950 = vunpack.c.l.b16 %v938
        %v951 = vunpack.c.l.b16 %v939
        %v952 = vunpack.c.l.b16 %v940
        %v953 = vpack.c.b16 %v950, %v949
        %v954 = vpack.c.b16 %v952, %v951
        %v958 = vsel %vm423, %v936, 0
        %960 = vmatprep.subr.bf16.mxu0 0
        %961 = vmatpush1.bf16.msra.mxu0 %v953
        %962 = vmatprep.subr.bf16.mxu0 0
        %963 = vmatpush1.bf16.msra.mxu0 %v954
        %964 = vmatprep.subr.bf16.mxu0 0
        %965 = vmatpush1.bf16.msra.mxu0 0
        %966 = vmatprep.subr.bf16.mxu0 0
        %967 = vmatpush1.bf16.msra.mxu0 0
        %968 = vmatprep.subr.bf16.mxu0 0
        %969 = vmatpush1.bf16.msra.mxu0 0
        %970 = vmatprep.subr.bf16.mxu0 0
        %971 = vmatpush1.bf16.msra.mxu0 0
        %972 = vmatprep.subr.bf16.mxu0 0
        %973 = vmatpush1.bf16.msra.mxu0 0
        %974 = vmatprep.subr.bf16.mxu0 0
        %975 = vmatpush1.bf16.msra.mxu0 0
        %976 = vmatprep.subr.bf16.mxu0 0
        %977 = vmatpush1.bf16.msra.mxu0 0
        %978 = vmatprep.subr.bf16.mxu0 0
        %979 = vmatpush1.bf16.msra.mxu0 0
        %980 = vmatprep.subr.bf16.mxu0 0
        %981 = vmatpush1.bf16.msra.mxu0 0
        %982 = vmatprep.subr.bf16.mxu0 0
        %983 = vmatpush1.bf16.msra.mxu0 0
        %984 = vmatprep.subr.bf16.mxu0 0
        %985 = vmatpush1.bf16.msra.mxu0 0
        %986 = vmatprep.subr.bf16.mxu0 0
        %987 = vmatpush1.bf16.msra.mxu0 0
        %988 = vmatprep.subr.bf16.mxu0 0
        %989 = vmatpush1.bf16.msra.mxu0 0
        %990 = vmatprep.subr.bf16.mxu0 0
        %991 = vmatpush1.bf16.msra.mxu0 0
        %992 = vmatprep.mubr.bf16.mxu0 0
        %993 = vmatmul.mubr.bf16.gmra.mrb[0].mxu0 %v958
        %v994 = vpop.f32.mrb[0].mxu0
        %v995 = vadd.f32 %v944, %v994
        %v996 = vpop.f32.mrb[0].mxu0
        %v997 = vpop.f32.mrb[0].mxu0
        %v998 = vpop.f32.mrb[0].mxu0
        %999 = vdwg.mxu0
        %v1000 = vadd.f32 %v393, %v995
        %v1001 = vsel %vm423, %v1000, 0.0
        %1002 = vadd.xlane.f32.xlu0 %v1001
        %v1003 = vpop.xlane.xlu0 %1002
        %v1004 = vrcp.pop 32.0
        %v1005 = vmul.f32 %v1003, %v1004
        %v1006 = vsub.f32 %v1000, %v1005
        %v1007 = vmul.f32 %v1006, %v1006
        %v1008 = vsel %vm423, %v1007, 0.0
        %1009 = vadd.xlane.f32.xlu0 %v1008
        %v1010 = vpop.xlane.xlu0 %1009
        %v1011 = vmul.f32 %v1010, %v1004
        %v1012 = vadd.f32 %v1011, 1e-05
        %v1013 = vrsqrt.pop %v1012
        %v1014 = vmul.f32 %v1006, %v1013
        %v1015 = vlaneseq
        %v1016 = vshrl.u32 %v1015, 7
        %v1017 = vsub.s32 0, %v1016
        %v1018 = vrot.slane %v398, %v1017
        %v1019 = vmul.f32 %v1014, %v1018
        %v1020 = vlaneseq
        %v1021 = vshrl.u32 %v1020, 7
        %v1022 = vsub.s32 0, %v1021
        %v1023 = vrot.slane %v399, %v1022
        %v1024 = vadd.f32 %v1019, %v1023
        %v1025 = vpack.c.bf16 %v1024, %v1024
        %v1026 = vld [vmem:[%s3] sm:$0xf]
        %v1027 = vld [vmem:[%s3 + $0x4] sm:$0xf]
        %v1028 = vld [vmem:[%s3 + $0x8] sm:$0xf]
        %v1029 = vld [vmem:[%s3 + $0xc] sm:$0xf]
        %v1030 = vlaneseq
        %v1031 = vshrl.u32 %v1030, 7
        %v1032 = vsub.s32 0, %v1031
        %v1033 = vrot.slane %v396, %v1032
        %v1038 = vunpack.c.l.b16 %v1026
        %v1039 = vunpack.c.l.b16 %v1027
        %v1040 = vunpack.c.l.b16 %v1028
        %v1041 = vunpack.c.l.b16 %v1029
        %v1042 = vpack.c.b16 %v1039, %v1038
        %v1043 = vpack.c.b16 %v1041, %v1040
        %v1047 = vsel %vm423, %v1025, 0
        %1049 = vmatprep.subr.bf16.mxu0 0
        %1050 = vmatpush1.bf16.msra.mxu0 %v1042
        %1051 = vmatprep.subr.bf16.mxu0 0
        %1052 = vmatpush1.bf16.msra.mxu0 %v1043
        %1053 = vmatprep.subr.bf16.mxu0 0
        %1054 = vmatpush1.bf16.msra.mxu0 0
        %1055 = vmatprep.subr.bf16.mxu0 0
        %1056 = vmatpush1.bf16.msra.mxu0 0
        %1057 = vmatprep.subr.bf16.mxu0 0
        %1058 = vmatpush1.bf16.msra.mxu0 0
        %1059 = vmatprep.subr.bf16.mxu0 0
        %1060 = vmatpush1.bf16.msra.mxu0 0
        %1061 = vmatprep.subr.bf16.mxu0 0
        %1062 = vmatpush1.bf16.msra.mxu0 0
        %1063 = vmatprep.subr.bf16.mxu0 0
        %1064 = vmatpush1.bf16.msra.mxu0 0
        %1065 = vmatprep.subr.bf16.mxu0 0
        %1066 = vmatpush1.bf16.msra.mxu0 0
        %1067 = vmatprep.subr.bf16.mxu0 0
        %1068 = vmatpush1.bf16.msra.mxu0 0
        %1069 = vmatprep.subr.bf16.mxu0 0
        %1070 = vmatpush1.bf16.msra.mxu0 0
        %1071 = vmatprep.subr.bf16.mxu0 0
        %1072 = vmatpush1.bf16.msra.mxu0 0
        %1073 = vmatprep.subr.bf16.mxu0 0
        %1074 = vmatpush1.bf16.msra.mxu0 0
        %1075 = vmatprep.subr.bf16.mxu0 0
        %1076 = vmatpush1.bf16.msra.mxu0 0
        %1077 = vmatprep.subr.bf16.mxu0 0
        %1078 = vmatpush1.bf16.msra.mxu0 0
        %1079 = vmatprep.subr.bf16.mxu0 0
        %1080 = vmatpush1.bf16.msra.mxu0 0
        %1081 = vmatprep.mubr.bf16.mxu0 0
        %1082 = vmatmul.mubr.bf16.gmra.mrb[0].mxu0 %v1047
        %v1083 = vpop.f32.mrb[0].mxu0
        %v1084 = vadd.f32 %v1033, %v1083
        %v1085 = vpop.f32.mrb[0].mxu0
        %v1086 = vpop.f32.mrb[0].mxu0
        %v1087 = vpop.f32.mrb[0].mxu0
        %1088 = vdwg.mxu0
        %v1089 = vmax.f32 %v1084, 0.0
        %v1090 = vpack.c.bf16 %v1089, %v1089
        %v1091 = vld [vmem:[%s4] sm:$0xf]
        %v1092 = vld [vmem:[%s4 + $0x4] sm:$0xf]
        %v1093 = vld [vmem:[%s4 + $0x8] sm:$0xf]
        %v1094 = vld [vmem:[%s4 + $0xc] sm:$0xf]
        %v1095 = vld [vmem:[%s4 + $0x10] sm:$0xf]
        %v1096 = vld [vmem:[%s4 + $0x14] sm:$0xf]
        %v1097 = vld [vmem:[%s4 + $0x18] sm:$0xf]
        %v1098 = vld [vmem:[%s4 + $0x1c] sm:$0xf]
        %v1099 = vlaneseq
        %v1100 = vshrl.u32 %v1099, 7
        %v1101 = vsub.s32 0, %v1100
        %v1102 = vrot.slane %v397, %v1101
        %v1111 = vunpack.c.l.b16 %v1091
        %v1112 = vunpack.c.l.b16 %v1092
        %v1113 = vunpack.c.l.b16 %v1093
        %v1114 = vunpack.c.l.b16 %v1094
        %v1115 = vunpack.c.l.b16 %v1095
        %v1116 = vunpack.c.l.b16 %v1096
        %v1117 = vunpack.c.l.b16 %v1097
        %v1118 = vunpack.c.l.b16 %v1098
        %v1119 = vpack.c.b16 %v1112, %v1111
        %v1120 = vpack.c.b16 %v1114, %v1113
        %v1121 = vpack.c.b16 %v1116, %v1115
        %v1122 = vpack.c.b16 %v1118, %v1117
        %vm1127 = vcmask 523264
        %v1129 = vsel %vm1127, %v1090, 0
        %1131 = vmatprep.subr.bf16.mxu0 0
        %1132 = vmatpush1.bf16.msra.mxu0 %v1119
        %1133 = vmatprep.subr.bf16.mxu0 0
        %1134 = vmatpush1.bf16.msra.mxu0 %v1120
        %1135 = vmatprep.subr.bf16.mxu0 0
        %1136 = vmatpush1.bf16.msra.mxu0 %v1121
        %1137 = vmatprep.subr.bf16.mxu0 0
        %1138 = vmatpush1.bf16.msra.mxu0 %v1122
        %1139 = vmatprep.subr.bf16.mxu0 0
        %1140 = vmatpush1.bf16.msra.mxu0 0
        %1141 = vmatprep.subr.bf16.mxu0 0
        %1142 = vmatpush1.bf16.msra.mxu0 0
        %1143 = vmatprep.subr.bf16.mxu0 0
        %1144 = vmatpush1.bf16.msra.mxu0 0
        %1145 = vmatprep.subr.bf16.mxu0 0
        %1146 = vmatpush1.bf16.msra.mxu0 0
        %1147 = vmatprep.subr.bf16.mxu0 0
        %1148 = vmatpush1.bf16.msra.mxu0 0
        %1149 = vmatprep.subr.bf16.mxu0 0
        %1150 = vmatpush1.bf16.msra.mxu0 0
        %1151 = vmatprep.subr.bf16.mxu0 0
        %1152 = vmatpush1.bf16.msra.mxu0 0
        %1153 = vmatprep.subr.bf16.mxu0 0
        %1154 = vmatpush1.bf16.msra.mxu0 0
        %1155 = vmatprep.subr.bf16.mxu0 0
        %1156 = vmatpush1.bf16.msra.mxu0 0
        %1157 = vmatprep.subr.bf16.mxu0 0
        %1158 = vmatpush1.bf16.msra.mxu0 0
        %1159 = vmatprep.subr.bf16.mxu0 0
        %1160 = vmatpush1.bf16.msra.mxu0 0
        %1161 = vmatprep.subr.bf16.mxu0 0
        %1162 = vmatpush1.bf16.msra.mxu0 0
        %1163 = vmatprep.mubr.bf16.mxu0 0
        %1164 = vmatmul.mubr.bf16.gmra.mrb[0].mxu0 %v1129
        %v1165 = vpop.f32.mrb[0].mxu0
        %v1166 = vadd.f32 %v1102, %v1165
        %v1167 = vpop.f32.mrb[0].mxu0
        %v1168 = vpop.f32.mrb[0].mxu0
        %v1169 = vpop.f32.mrb[0].mxu0
        %1170 = vdwg.mxu0
        %v1171 = vadd.f32 %v1024, %v1166
        %v1172 = vsel %vm423, %v1171, 0.0
        %1173 = vadd.xlane.f32.xlu0 %v1172
        %v1174 = vpop.xlane.xlu0 %1173
        %v1175 = vmul.f32 %v1174, %v1004
        %v1176 = vsub.f32 %v1171, %v1175
        %v1177 = vmul.f32 %v1176, %v1176
        %v1178 = vsel %vm423, %v1177, 0.0
        %1179 = vadd.xlane.f32.xlu0 %v1178
        %v1180 = vpop.xlane.xlu0 %1179
        %v1181 = vmul.f32 %v1180, %v1004
        %v1182 = vadd.f32 %v1181, 1e-05
        %v1183 = vrsqrt.pop %v1182
        %v1184 = vmul.f32 %v1176, %v1183
        %v1185 = vlaneseq
        %v1186 = vshrl.u32 %v1185, 7
        %v1187 = vsub.s32 0, %v1186
        %v1188 = vrot.slane %v400, %v1187
        %v1189 = vmul.f32 %v1184, %v1188
        %v1190 = vlaneseq
        %v1191 = vshrl.u32 %v1190, 7
        %v1192 = vsub.s32 0, %v1191
        %v1193 = vrot.slane %v401, %v1192
        %v1194 = vadd.f32 %v1189, %v1193
        %v1195 = vld [vmem:[%s8 + $0x8] sm:$0x1]
        %v1196 = vld [vmem:[%s8 + $0x9] sm:$0x1]
        %v1197 = vld [vmem:[%s8 + $0xa] sm:$0x1]
        %v1198 = vld [vmem:[%s8 + $0xb] sm:$0x1]
        %v1199 = vld [vmem:[%s8 + $0xc] sm:$0x1]
        %v1200 = vld [vmem:[%s8 + $0xd] sm:$0x1]
        %v1201 = vld [vmem:[%s8 + $0xe] sm:$0x1]
        %v1202 = vld [vmem:[%s8 + $0xf] sm:$0x1]
        %v1203 = vpack.c.bf16 %v1194, %v1194
        %s1204 = scalar_lea.vmem %s1, 16
        %v1205 = vld [vmem:[%s1204] sm:$0xf]
        %v1206 = vld [vmem:[%s1204 + $0x4] sm:$0xf]
        %v1207 = vld [vmem:[%s1204 + $0x8] sm:$0xf]
        %v1208 = vld [vmem:[%s1204 + $0xc] sm:$0xf]
        %v1209 = vlaneseq
        %v1210 = vshrl.u32 %v1209, 7
        %v1211 = vsub.s32 0, %v1210
        %v1212 = vrot.slane %v1195, %v1211
        %v1217 = vunpack.c.l.b16 %v1205
        %v1218 = vunpack.c.l.b16 %v1206
        %v1219 = vunpack.c.l.b16 %v1207
        %v1220 = vunpack.c.l.b16 %v1208
        %v1221 = vpack.c.b16 %v1218, %v1217
        %v1222 = vpack.c.b16 %v1220, %v1219
        %v1226 = vsel %vm423, %v1203, 0
        %1228 = vmatprep.subr.bf16.mxu0 0
        %1229 = vmatpush1.bf16.msra.mxu0 %v1221
        %1230 = vmatprep.subr.bf16.mxu0 0
        %1231 = vmatpush1.bf16.msra.mxu0 %v1222
        %1232 = vmatprep.subr.bf16.mxu0 0
        %1233 = vmatpush1.bf16.msra.mxu0 0
        %1234 = vmatprep.subr.bf16.mxu0 0
        %1235 = vmatpush1.bf16.msra.mxu0 0
        %1236 = vmatprep.subr.bf16.mxu0 0
        %1237 = vmatpush1.bf16.msra.mxu0 0
        %1238 = vmatprep.subr.bf16.mxu0 0
        %1239 = vmatpush1.bf16.msra.mxu0 0
        %1240 = vmatprep.subr.bf16.mxu0 0
        %1241 = vmatpush1.bf16.msra.mxu0 0
        %1242 = vmatprep.subr.bf16.mxu0 0
        %1243 = vmatpush1.bf16.msra.mxu0 0
        %1244 = vmatprep.subr.bf16.mxu0 0
        %1245 = vmatpush1.bf16.msra.mxu0 0
        %1246 = vmatprep.subr.bf16.mxu0 0
        %1247 = vmatpush1.bf16.msra.mxu0 0
        %1248 = vmatprep.subr.bf16.mxu0 0
        %1249 = vmatpush1.bf16.msra.mxu0 0
        %1250 = vmatprep.subr.bf16.mxu0 0
        %1251 = vmatpush1.bf16.msra.mxu0 0
        %1252 = vmatprep.subr.bf16.mxu0 0
        %1253 = vmatpush1.bf16.msra.mxu0 0
        %1254 = vmatprep.subr.bf16.mxu0 0
        %1255 = vmatpush1.bf16.msra.mxu0 0
        %1256 = vmatprep.subr.bf16.mxu0 0
        %1257 = vmatpush1.bf16.msra.mxu0 0
        %1258 = vmatprep.subr.bf16.mxu0 0
        %1259 = vmatpush1.bf16.msra.mxu0 0
        %1260 = vmatprep.mubr.bf16.mxu0 0
        %1261 = vmatmul.mubr.bf16.gmra.mrb[0].mxu0 %v1226
        %v1262 = vpop.f32.mrb[0].mxu0
        %v1263 = vadd.f32 %v1212, %v1262
        %v1264 = vpop.f32.mrb[0].mxu0
        %v1265 = vpop.f32.mrb[0].mxu0
        %v1266 = vpop.f32.mrb[0].mxu0
        %1267 = vdwg.mxu0
        %1269 = vrot.lane.b32.xlu0 %v1263, 120
        %v1270 = vpop.permute.xlu0 %1269
        %1272 = vrot.lane.b32.xlu0 %v1263, 112
        %v1273 = vpop.permute.xlu0 %1272
        %1275 = vrot.lane.b32.xlu0 %v1263, 104
        %v1276 = vpop.permute.xlu0 %1275
        %v1278 = vpack.c.bf16 %v1263, %v1263
        %v1279 = vpack.c.bf16 %v1270, %v1270
        %v1280 = vpack.c.bf16 %v1273, %v1273
        %v1281 = vpack.c.bf16 %v1276, %v1276
        %1283 = vrot.lane.b32.xlu0 %v1278, 96
        %v1284 = vpop.permute.xlu0 %1283
        %v1286 = vsel %vm484, %v1278, 0
        %v1289 = vsel %vm484, %v1284, 0
        %1291 = vmatprep.subr.bf16.mxu0 0
        %1292 = vmatpush1.bf16.xpose.msra.mxu0 %v1289
        %1293 = vmatprep.subr.bf16.mxu0 0
        %1294 = vmatpush1.bf16.xpose.msra.mxu0 0
        %1295 = vmatprep.subr.bf16.mxu0 0
        %1296 = vmatpush1.bf16.xpose.msra.mxu0 0
        %1297 = vmatprep.subr.bf16.mxu0 0
        %1298 = vmatpush1.bf16.xpose.msra.mxu0 0
        %1299 = vmatprep.subr.bf16.mxu0 0
        %1300 = vmatpush1.bf16.xpose.msra.mxu0 0
        %1301 = vmatprep.subr.bf16.mxu0 0
        %1302 = vmatpush1.bf16.xpose.msra.mxu0 0
        %1303 = vmatprep.subr.bf16.mxu0 0
        %1304 = vmatpush1.bf16.xpose.msra.mxu0 0
        %1305 = vmatprep.subr.bf16.mxu0 0
        %1306 = vmatpush1.bf16.xpose.msra.mxu0 0
        %1307 = vmatprep.subr.bf16.mxu0 0
        %1308 = vmatpush1.bf16.xpose.msra.mxu0 0
        %1309 = vmatprep.subr.bf16.mxu0 0
        %1310 = vmatpush1.bf16.xpose.msra.mxu0 0
        %1311 = vmatprep.subr.bf16.mxu0 0
        %1312 = vmatpush1.bf16.xpose.msra.mxu0 0
        %1313 = vmatprep.subr.bf16.mxu0 0
        %1314 = vmatpush1.bf16.xpose.msra.mxu0 0
        %1315 = vmatprep.subr.bf16.mxu0 0
        %1316 = vmatpush1.bf16.xpose.msra.mxu0 0
        %1317 = vmatprep.subr.bf16.mxu0 0
        %1318 = vmatpush1.bf16.xpose.msra.mxu0 0
        %1319 = vmatprep.subr.bf16.mxu0 0
        %1320 = vmatpush1.bf16.xpose.msra.mxu0 0
        %1321 = vmatprep.subr.bf16.mxu0 0
        %1322 = vmatpush1.bf16.xpose.msra.mxu0 0
        %1323 = vmatprep.mubr.bf16.mxu0 0
        %1324 = vmatmul.mubr.bf16.gmra.mrb[0].mxu0 %v1286
        %v1325 = vpop.f32.mrb[0].mxu0
        %v1326 = vadd.f32 0.0, %v1325
        %v1327 = vpop.f32.mrb[0].mxu0
        %v1328 = vpop.f32.mrb[0].mxu0
        %v1329 = vpop.f32.mrb[0].mxu0
        %1330 = vdwg.mxu0
        %1332 = vrot.lane.b32.xlu0 %v1279, 96
        %v1333 = vpop.permute.xlu0 %1332
        %v1335 = vsel %vm484, %v1279, 0
        %v1338 = vsel %vm484, %v1333, 0
        %1340 = vmatprep.subr.bf16.mxu0 0
        %1341 = vmatpush1.bf16.xpose.msra.mxu0 %v1338
        %1342 = vmatprep.subr.bf16.mxu0 0
        %1343 = vmatpush1.bf16.xpose.msra.mxu0 0
        %1344 = vmatprep.subr.bf16.mxu0 0
        %1345 = vmatpush1.bf16.xpose.msra.mxu0 0
        %1346 = vmatprep.subr.bf16.mxu0 0
        %1347 = vmatpush1.bf16.xpose.msra.mxu0 0
        %1348 = vmatprep.subr.bf16.mxu0 0
        %1349 = vmatpush1.bf16.xpose.msra.mxu0 0
        %1350 = vmatprep.subr.bf16.mxu0 0
        %1351 = vmatpush1.bf16.xpose.msra.mxu0 0
        %1352 = vmatprep.subr.bf16.mxu0 0
        %1353 = vmatpush1.bf16.xpose.msra.mxu0 0
        %1354 = vmatprep.subr.bf16.mxu0 0
        %1355 = vmatpush1.bf16.xpose.msra.mxu0 0
        %1356 = vmatprep.subr.bf16.mxu0 0
        %1357 = vmatpush1.bf16.xpose.msra.mxu0 0
        %1358 = vmatprep.subr.bf16.mxu0 0
        %1359 = vmatpush1.bf16.xpose.msra.mxu0 0
        %1360 = vmatprep.subr.bf16.mxu0 0
        %1361 = vmatpush1.bf16.xpose.msra.mxu0 0
        %1362 = vmatprep.subr.bf16.mxu0 0
        %1363 = vmatpush1.bf16.xpose.msra.mxu0 0
        %1364 = vmatprep.subr.bf16.mxu0 0
        %1365 = vmatpush1.bf16.xpose.msra.mxu0 0
        %1366 = vmatprep.subr.bf16.mxu0 0
        %1367 = vmatpush1.bf16.xpose.msra.mxu0 0
        %1368 = vmatprep.subr.bf16.mxu0 0
        %1369 = vmatpush1.bf16.xpose.msra.mxu0 0
        %1370 = vmatprep.subr.bf16.mxu0 0
        %1371 = vmatpush1.bf16.xpose.msra.mxu0 0
        %1372 = vmatprep.mubr.bf16.mxu0 0
        %1373 = vmatmul.mubr.bf16.gmra.mrb[0].mxu0 %v1335
        %v1374 = vpop.f32.mrb[0].mxu0
        %v1375 = vadd.f32 0.0, %v1374
        %v1376 = vpop.f32.mrb[0].mxu0
        %v1377 = vpop.f32.mrb[0].mxu0
        %v1378 = vpop.f32.mrb[0].mxu0
        %1379 = vdwg.mxu0
        %1381 = vrot.lane.b32.xlu0 %v1280, 96
        %v1382 = vpop.permute.xlu0 %1381
        %v1384 = vsel %vm484, %v1280, 0
        %v1387 = vsel %vm484, %v1382, 0
        %1389 = vmatprep.subr.bf16.mxu0 0
        %1390 = vmatpush1.bf16.xpose.msra.mxu0 %v1387
        %1391 = vmatprep.subr.bf16.mxu0 0
        %1392 = vmatpush1.bf16.xpose.msra.mxu0 0
        %1393 = vmatprep.subr.bf16.mxu0 0
        %1394 = vmatpush1.bf16.xpose.msra.mxu0 0
        %1395 = vmatprep.subr.bf16.mxu0 0
        %1396 = vmatpush1.bf16.xpose.msra.mxu0 0
        %1397 = vmatprep.subr.bf16.mxu0 0
        %1398 = vmatpush1.bf16.xpose.msra.mxu0 0
        %1399 = vmatprep.subr.bf16.mxu0 0
        %1400 = vmatpush1.bf16.xpose.msra.mxu0 0
        %1401 = vmatprep.subr.bf16.mxu0 0
        %1402 = vmatpush1.bf16.xpose.msra.mxu0 0
        %1403 = vmatprep.subr.bf16.mxu0 0
        %1404 = vmatpush1.bf16.xpose.msra.mxu0 0
        %1405 = vmatprep.subr.bf16.mxu0 0
        %1406 = vmatpush1.bf16.xpose.msra.mxu0 0
        %1407 = vmatprep.subr.bf16.mxu0 0
        %1408 = vmatpush1.bf16.xpose.msra.mxu0 0
        %1409 = vmatprep.subr.bf16.mxu0 0
        %1410 = vmatpush1.bf16.xpose.msra.mxu0 0
        %1411 = vmatprep.subr.bf16.mxu0 0
        %1412 = vmatpush1.bf16.xpose.msra.mxu0 0
        %1413 = vmatprep.subr.bf16.mxu0 0
        %1414 = vmatpush1.bf16.xpose.msra.mxu0 0
        %1415 = vmatprep.subr.bf16.mxu0 0
        %1416 = vmatpush1.bf16.xpose.msra.mxu0 0
        %1417 = vmatprep.subr.bf16.mxu0 0
        %1418 = vmatpush1.bf16.xpose.msra.mxu0 0
        %1419 = vmatprep.subr.bf16.mxu0 0
        %1420 = vmatpush1.bf16.xpose.msra.mxu0 0
        %1421 = vmatprep.mubr.bf16.mxu0 0
        %1422 = vmatmul.mubr.bf16.gmra.mrb[0].mxu0 %v1384
        %v1423 = vpop.f32.mrb[0].mxu0
        %v1424 = vadd.f32 0.0, %v1423
        %v1425 = vpop.f32.mrb[0].mxu0
        %v1426 = vpop.f32.mrb[0].mxu0
        %v1427 = vpop.f32.mrb[0].mxu0
        %1428 = vdwg.mxu0
        %1430 = vrot.lane.b32.xlu0 %v1281, 96
        %v1431 = vpop.permute.xlu0 %1430
        %v1433 = vsel %vm484, %v1281, 0
        %v1436 = vsel %vm484, %v1431, 0
        %1438 = vmatprep.subr.bf16.mxu0 0
        %1439 = vmatpush1.bf16.xpose.msra.mxu0 %v1436
        %1440 = vmatprep.subr.bf16.mxu0 0
        %1441 = vmatpush1.bf16.xpose.msra.mxu0 0
        %1442 = vmatprep.subr.bf16.mxu0 0
        %1443 = vmatpush1.bf16.xpose.msra.mxu0 0
        %1444 = vmatprep.subr.bf16.mxu0 0
        %1445 = vmatpush1.bf16.xpose.msra.mxu0 0
        %1446 = vmatprep.subr.bf16.mxu0 0
        %1447 = vmatpush1.bf16.xpose.msra.mxu0 0
        %1448 = vmatprep.subr.bf16.mxu0 0
        %1449 = vmatpush1.bf16.xpose.msra.mxu0 0
        %1450 = vmatprep.subr.bf16.mxu0 0
        %1451 = vmatpush1.bf16.xpose.msra.mxu0 0
        %1452 = vmatprep.subr.bf16.mxu0 0
        %1453 = vmatpush1.bf16.xpose.msra.mxu0 0
        %1454 = vmatprep.subr.bf16.mxu0 0
        %1455 = vmatpush1.bf16.xpose.msra.mxu0 0
        %1456 = vmatprep.subr.bf16.mxu0 0
        %1457 = vmatpush1.bf16.xpose.msra.mxu0 0
        %1458 = vmatprep.subr.bf16.mxu0 0
        %1459 = vmatpush1.bf16.xpose.msra.mxu0 0
        %1460 = vmatprep.subr.bf16.mxu0 0
        %1461 = vmatpush1.bf16.xpose.msra.mxu0 0
        %1462 = vmatprep.subr.bf16.mxu0 0
        %1463 = vmatpush1.bf16.xpose.msra.mxu0 0
        %1464 = vmatprep.subr.bf16.mxu0 0
        %1465 = vmatpush1.bf16.xpose.msra.mxu0 0
        %1466 = vmatprep.subr.bf16.mxu0 0
        %1467 = vmatpush1.bf16.xpose.msra.mxu0 0
        %1468 = vmatprep.subr.bf16.mxu0 0
        %1469 = vmatpush1.bf16.xpose.msra.mxu0 0
        %1470 = vmatprep.mubr.bf16.mxu0 0
        %1471 = vmatmul.mubr.bf16.gmra.mrb[0].mxu0 %v1433
        %v1472 = vpop.f32.mrb[0].mxu0
        %v1473 = vadd.f32 0.0, %v1472
        %v1474 = vpop.f32.mrb[0].mxu0
        %v1475 = vpop.f32.mrb[0].mxu0
        %v1476 = vpop.f32.mrb[0].mxu0
        %1477 = vdwg.mxu0
        %v1478 = vsel %vm484, %v1326, -inf
        %1479 = vmax.xlane.f32.xlu0 %v1478
        %v1480 = vpop.xlane.xlu0 %1479
        %v1481 = vsel %vm484, %v1375, -inf
        %1482 = vmax.xlane.f32.xlu0 %v1481
        %v1483 = vpop.xlane.xlu0 %1482
        %v1484 = vsel %vm484, %v1424, -inf
        %1485 = vmax.xlane.f32.xlu0 %v1484
        %v1486 = vpop.xlane.xlu0 %1485
        %v1487 = vsel %vm484, %v1473, -inf
        %1488 = vmax.xlane.f32.xlu0 %v1487
        %v1489 = vpop.xlane.xlu0 %1488
        %v1490 = vsub.f32 %v1326, %v1480
        %v1491 = vsub.f32 %v1375, %v1483
        %v1492 = vsub.f32 %v1424, %v1486
        %v1493 = vsub.f32 %v1473, %v1489
        %v1494 = vmul.f32 %v1490, 1.442695
        %v1495 = vpow.pop %v1494
        %v1496 = vmul.f32 %v1491, 1.442695
        %v1497 = vpow.pop %v1496
        %v1498 = vmul.f32 %v1492, 1.442695
        %v1499 = vpow.pop %v1498
        %v1500 = vmul.f32 %v1493, 1.442695
        %v1501 = vpow.pop %v1500
        %v1502 = vsel %vm484, %v1495, 0.0
        %1503 = vadd.xlane.f32.xlu0 %v1502
        %v1504 = vpop.xlane.xlu0 %1503
        %v1505 = vsel %vm484, %v1497, 0.0
        %1506 = vadd.xlane.f32.xlu0 %v1505
        %v1507 = vpop.xlane.xlu0 %1506
        %v1508 = vsel %vm484, %v1499, 0.0
        %1509 = vadd.xlane.f32.xlu0 %v1508
        %v1510 = vpop.xlane.xlu0 %1509
        %v1511 = vsel %vm484, %v1501, 0.0
        %1512 = vadd.xlane.f32.xlu0 %v1511
        %v1513 = vpop.xlane.xlu0 %1512
        %v1514 = vrcp.pop %v1504
        %v1515 = vrcp.pop %v1507
        %v1516 = vrcp.pop %v1510
        %v1517 = vrcp.pop %v1513
        %v1518 = vmul.f32 %v1495, %v1514
        %v1519 = vmul.f32 %v1497, %v1515
        %v1520 = vmul.f32 %v1499, %v1516
        %v1521 = vmul.f32 %v1501, %v1517
        %v1522 = vpack.c.bf16 %v1518, %v1518
        %v1523 = vpack.c.bf16 %v1519, %v1519
        %v1524 = vpack.c.bf16 %v1520, %v1520
        %v1525 = vpack.c.bf16 %v1521, %v1521
        %1526 = vrot.lane.b32.xlu0 %v1278, 64
        %v1527 = vpop.permute.xlu0 %1526
        %v1529 = vsel %vm484, %v1522, 0
        %v1532 = vsel %vm731, %v1527, 0
        %1534 = vmatprep.subr.bf16.mxu0 0
        %1535 = vmatpush1.bf16.msra.mxu0 %v1532
        %1536 = vmatprep.subr.bf16.mxu0 0
        %1537 = vmatpush1.bf16.msra.mxu0 0
        %1538 = vmatprep.subr.bf16.mxu0 0
        %1539 = vmatpush1.bf16.msra.mxu0 0
        %1540 = vmatprep.subr.bf16.mxu0 0
        %1541 = vmatpush1.bf16.msra.mxu0 0
        %1542 = vmatprep.subr.bf16.mxu0 0
        %1543 = vmatpush1.bf16.msra.mxu0 0
        %1544 = vmatprep.subr.bf16.mxu0 0
        %1545 = vmatpush1.bf16.msra.mxu0 0
        %1546 = vmatprep.subr.bf16.mxu0 0
        %1547 = vmatpush1.bf16.msra.mxu0 0
        %1548 = vmatprep.subr.bf16.mxu0 0
        %1549 = vmatpush1.bf16.msra.mxu0 0
        %1550 = vmatprep.subr.bf16.mxu0 0
        %1551 = vmatpush1.bf16.msra.mxu0 0
        %1552 = vmatprep.subr.bf16.mxu0 0
        %1553 = vmatpush1.bf16.msra.mxu0 0
        %1554 = vmatprep.subr.bf16.mxu0 0
        %1555 = vmatpush1.bf16.msra.mxu0 0
        %1556 = vmatprep.subr.bf16.mxu0 0
        %1557 = vmatpush1.bf16.msra.mxu0 0
        %1558 = vmatprep.subr.bf16.mxu0 0
        %1559 = vmatpush1.bf16.msra.mxu0 0
        %1560 = vmatprep.subr.bf16.mxu0 0
        %1561 = vmatpush1.bf16.msra.mxu0 0
        %1562 = vmatprep.subr.bf16.mxu0 0
        %1563 = vmatpush1.bf16.msra.mxu0 0
        %1564 = vmatprep.subr.bf16.mxu0 0
        %1565 = vmatpush1.bf16.msra.mxu0 0
        %1566 = vmatprep.mubr.bf16.mxu0 0
        %1567 = vmatmul.mubr.bf16.gmra.mrb[0].mxu0 %v1529
        %v1568 = vpop.f32.mrb[0].mxu0
        %v1569 = vadd.f32 0.0, %v1568
        %v1570 = vpop.f32.mrb[0].mxu0
        %v1571 = vpop.f32.mrb[0].mxu0
        %v1572 = vpop.f32.mrb[0].mxu0
        %1573 = vdwg.mxu0
        %1574 = vrot.lane.b32.xlu0 %v1279, 64
        %v1575 = vpop.permute.xlu0 %1574
        %v1577 = vsel %vm484, %v1523, 0
        %v1580 = vsel %vm731, %v1575, 0
        %1582 = vmatprep.subr.bf16.mxu0 0
        %1583 = vmatpush1.bf16.msra.mxu0 %v1580
        %1584 = vmatprep.subr.bf16.mxu0 0
        %1585 = vmatpush1.bf16.msra.mxu0 0
        %1586 = vmatprep.subr.bf16.mxu0 0
        %1587 = vmatpush1.bf16.msra.mxu0 0
        %1588 = vmatprep.subr.bf16.mxu0 0
        %1589 = vmatpush1.bf16.msra.mxu0 0
        %1590 = vmatprep.subr.bf16.mxu0 0
        %1591 = vmatpush1.bf16.msra.mxu0 0
        %1592 = vmatprep.subr.bf16.mxu0 0
        %1593 = vmatpush1.bf16.msra.mxu0 0
        %1594 = vmatprep.subr.bf16.mxu0 0
        %1595 = vmatpush1.bf16.msra.mxu0 0
        %1596 = vmatprep.subr.bf16.mxu0 0
        %1597 = vmatpush1.bf16.msra.mxu0 0
        %1598 = vmatprep.subr.bf16.mxu0 0
        %1599 = vmatpush1.bf16.msra.mxu0 0
        %1600 = vmatprep.subr.bf16.mxu0 0
        %1601 = vmatpush1.bf16.msra.mxu0 0
        %1602 = vmatprep.subr.bf16.mxu0 0
        %1603 = vmatpush1.bf16.msra.mxu0 0
        %1604 = vmatprep.subr.bf16.mxu0 0
        %1605 = vmatpush1.bf16.msra.mxu0 0
        %1606 = vmatprep.subr.bf16.mxu0 0
        %1607 = vmatpush1.bf16.msra.mxu0 0
        %1608 = vmatprep.subr.bf16.mxu0 0
        %1609 = vmatpush1.bf16.msra.mxu0 0
        %1610 = vmatprep.subr.bf16.mxu0 0
        %1611 = vmatpush1.bf16.msra.mxu0 0
        %1612 = vmatprep.subr.bf16.mxu0 0
        %1613 = vmatpush1.bf16.msra.mxu0 0
        %1614 = vmatprep.mubr.bf16.mxu0 0
        %1615 = vmatmul.mubr.bf16.gmra.mrb[0].mxu0 %v1577
        %v1616 = vpop.f32.mrb[0].mxu0
        %v1617 = vadd.f32 0.0, %v1616
        %v1618 = vpop.f32.mrb[0].mxu0
        %v1619 = vpop.f32.mrb[0].mxu0
        %v1620 = vpop.f32.mrb[0].mxu0
        %1621 = vdwg.mxu0
        %1622 = vrot.lane.b32.xlu0 %v1280, 64
        %v1623 = vpop.permute.xlu0 %1622
        %v1625 = vsel %vm484, %v1524, 0
        %v1628 = vsel %vm731, %v1623, 0
        %1630 = vmatprep.subr.bf16.mxu0 0
        %1631 = vmatpush1.bf16.msra.mxu0 %v1628
        %1632 = vmatprep.subr.bf16.mxu0 0
        %1633 = vmatpush1.bf16.msra.mxu0 0
        %1634 = vmatprep.subr.bf16.mxu0 0
        %1635 = vmatpush1.bf16.msra.mxu0 0
        %1636 = vmatprep.subr.bf16.mxu0 0
        %1637 = vmatpush1.bf16.msra.mxu0 0
        %1638 = vmatprep.subr.bf16.mxu0 0
        %1639 = vmatpush1.bf16.msra.mxu0 0
        %1640 = vmatprep.subr.bf16.mxu0 0
        %1641 = vmatpush1.bf16.msra.mxu0 0
        %1642 = vmatprep.subr.bf16.mxu0 0
        %1643 = vmatpush1.bf16.msra.mxu0 0
        %1644 = vmatprep.subr.bf16.mxu0 0
        %1645 = vmatpush1.bf16.msra.mxu0 0
        %1646 = vmatprep.subr.bf16.mxu0 0
        %1647 = vmatpush1.bf16.msra.mxu0 0
        %1648 = vmatprep.subr.bf16.mxu0 0
        %1649 = vmatpush1.bf16.msra.mxu0 0
        %1650 = vmatprep.subr.bf16.mxu0 0
        %1651 = vmatpush1.bf16.msra.mxu0 0
        %1652 = vmatprep.subr.bf16.mxu0 0
        %1653 = vmatpush1.bf16.msra.mxu0 0
        %1654 = vmatprep.subr.bf16.mxu0 0
        %1655 = vmatpush1.bf16.msra.mxu0 0
        %1656 = vmatprep.subr.bf16.mxu0 0
        %1657 = vmatpush1.bf16.msra.mxu0 0
        %1658 = vmatprep.subr.bf16.mxu0 0
        %1659 = vmatpush1.bf16.msra.mxu0 0
        %1660 = vmatprep.subr.bf16.mxu0 0
        %1661 = vmatpush1.bf16.msra.mxu0 0
        %1662 = vmatprep.mubr.bf16.mxu0 0
        %1663 = vmatmul.mubr.bf16.gmra.mrb[0].mxu0 %v1625
        %v1664 = vpop.f32.mrb[0].mxu0
        %v1665 = vadd.f32 0.0, %v1664
        %v1666 = vpop.f32.mrb[0].mxu0
        %v1667 = vpop.f32.mrb[0].mxu0
        %v1668 = vpop.f32.mrb[0].mxu0
        %1669 = vdwg.mxu0
        %1670 = vrot.lane.b32.xlu0 %v1281, 64
        %v1671 = vpop.permute.xlu0 %1670
        %v1673 = vsel %vm484, %v1525, 0
        %v1676 = vsel %vm731, %v1671, 0
        %1678 = vmatprep.subr.bf16.mxu0 0
        %1679 = vmatpush1.bf16.msra.mxu0 %v1676
        %1680 = vmatprep.subr.bf16.mxu0 0
        %1681 = vmatpush1.bf16.msra.mxu0 0
        %1682 = vmatprep.subr.bf16.mxu0 0
        %1683 = vmatpush1.bf16.msra.mxu0 0
        %1684 = vmatprep.subr.bf16.mxu0 0
        %1685 = vmatpush1.bf16.msra.mxu0 0
        %1686 = vmatprep.subr.bf16.mxu0 0
        %1687 = vmatpush1.bf16.msra.mxu0 0
        %1688 = vmatprep.subr.bf16.mxu0 0
        %1689 = vmatpush1.bf16.msra.mxu0 0
        %1690 = vmatprep.subr.bf16.mxu0 0
        %1691 = vmatpush1.bf16.msra.mxu0 0
        %1692 = vmatprep.subr.bf16.mxu0 0
        %1693 = vmatpush1.bf16.msra.mxu0 0
        %1694 = vmatprep.subr.bf16.mxu0 0
        %1695 = vmatpush1.bf16.msra.mxu0 0
        %1696 = vmatprep.subr.bf16.mxu0 0
        %1697 = vmatpush1.bf16.msra.mxu0 0
        %1698 = vmatprep.subr.bf16.mxu0 0
        %1699 = vmatpush1.bf16.msra.mxu0 0
        %1700 = vmatprep.subr.bf16.mxu0 0
        %1701 = vmatpush1.bf16.msra.mxu0 0
        %1702 = vmatprep.subr.bf16.mxu0 0
        %1703 = vmatpush1.bf16.msra.mxu0 0
        %1704 = vmatprep.subr.bf16.mxu0 0
        %1705 = vmatpush1.bf16.msra.mxu0 0
        %1706 = vmatprep.subr.bf16.mxu0 0
        %1707 = vmatpush1.bf16.msra.mxu0 0
        %1708 = vmatprep.subr.bf16.mxu0 0
        %1709 = vmatpush1.bf16.msra.mxu0 0
        %1710 = vmatprep.mubr.bf16.mxu0 0
        %1711 = vmatmul.mubr.bf16.gmra.mrb[0].mxu0 %v1673
        %v1712 = vpop.f32.mrb[0].mxu0
        %v1713 = vadd.f32 0.0, %v1712
        %v1714 = vpop.f32.mrb[0].mxu0
        %v1715 = vpop.f32.mrb[0].mxu0
        %v1716 = vpop.f32.mrb[0].mxu0
        %1717 = vdwg.mxu0
        %1719 = vrot.lane.b32.xlu0 %v1617, 8
        %v1720 = vpop.permute.xlu0 %1719
        %1723 = vrot.lane.b32.xlu0 %v1665, 16
        %v1724 = vpop.permute.xlu0 %1723
        %1727 = vrot.lane.b32.xlu0 %v1713, 24
        %v1728 = vpop.permute.xlu0 %1727
        %v1730 = vsel %vm484, %v1569, %v1720
        %v1731 = vsel %vm932, %v1730, %v1724
        %v1732 = vsel %vm934, %v1731, %v1728
        %v1733 = vpack.c.bf16 %v1732, %v1732
        %s1734 = scalar_lea.vmem %s2, 16
        %v1735 = vld [vmem:[%s1734] sm:$0xf]
        %v1736 = vld [vmem:[%s1734 + $0x4] sm:$0xf]
        %v1737 = vld [vmem:[%s1734 + $0x8] sm:$0xf]
        %v1738 = vld [vmem:[%s1734 + $0xc] sm:$0xf]
        %v1739 = vlaneseq
        %v1740 = vshrl.u32 %v1739, 7
        %v1741 = vsub.s32 0, %v1740
        %v1742 = vrot.slane %v1196, %v1741
        %v1747 = vunpack.c.l.b16 %v1735
        %v1748 = vunpack.c.l.b16 %v1736
        %v1749 = vunpack.c.l.b16 %v1737
        %v1750 = vunpack.c.l.b16 %v1738
        %v1751 = vpack.c.b16 %v1748, %v1747
        %v1752 = vpack.c.b16 %v1750, %v1749
        %v1756 = vsel %vm423, %v1733, 0
        %1758 = vmatprep.subr.bf16.mxu0 0
        %1759 = vmatpush1.bf16.msra.mxu0 %v1751
        %1760 = vmatprep.subr.bf16.mxu0 0
        %1761 = vmatpush1.bf16.msra.mxu0 %v1752
        %1762 = vmatprep.subr.bf16.mxu0 0
        %1763 = vmatpush1.bf16.msra.mxu0 0
        %1764 = vmatprep.subr.bf16.mxu0 0
        %1765 = vmatpush1.bf16.msra.mxu0 0
        %1766 = vmatprep.subr.bf16.mxu0 0
        %1767 = vmatpush1.bf16.msra.mxu0 0
        %1768 = vmatprep.subr.bf16.mxu0 0
        %1769 = vmatpush1.bf16.msra.mxu0 0
        %1770 = vmatprep.subr.bf16.mxu0 0
        %1771 = vmatpush1.bf16.msra.mxu0 0
        %1772 = vmatprep.subr.bf16.mxu0 0
        %1773 = vmatpush1.bf16.msra.mxu0 0
        %1774 = vmatprep.subr.bf16.mxu0 0
        %1775 = vmatpush1.bf16.msra.mxu0 0
        %1776 = vmatprep.subr.bf16.mxu0 0
        %1777 = vmatpush1.bf16.msra.mxu0 0
        %1778 = vmatprep.subr.bf16.mxu0 0
        %1779 = vmatpush1.bf16.msra.mxu0 0
        %1780 = vmatprep.subr.bf16.mxu0 0
        %1781 = vmatpush1.bf16.msra.mxu0 0
        %1782 = vmatprep.subr.bf16.mxu0 0
        %1783 = vmatpush1.bf16.msra.mxu0 0
        %1784 = vmatprep.subr.bf16.mxu0 0
        %1785 = vmatpush1.bf16.msra.mxu0 0
        %1786 = vmatprep.subr.bf16.mxu0 0
        %1787 = vmatpush1.bf16.msra.mxu0 0
        %1788 = vmatprep.subr.bf16.mxu0 0
        %1789 = vmatpush1.bf16.msra.mxu0 0
        %1790 = vmatprep.mubr.bf16.mxu0 0
        %1791 = vmatmul.mubr.bf16.gmra.mrb[0].mxu0 %v1756
        %v1792 = vpop.f32.mrb[0].mxu0
        %v1793 = vadd.f32 %v1742, %v1792
        %v1794 = vpop.f32.mrb[0].mxu0
        %v1795 = vpop.f32.mrb[0].mxu0
        %v1796 = vpop.f32.mrb[0].mxu0
        %1797 = vdwg.mxu0
        %v1798 = vadd.f32 %v1194, %v1793
        %v1799 = vsel %vm423, %v1798, 0.0
        %1800 = vadd.xlane.f32.xlu0 %v1799
        %v1801 = vpop.xlane.xlu0 %1800
        %v1802 = vmul.f32 %v1801, %v1004
        %v1803 = vsub.f32 %v1798, %v1802
        %v1804 = vmul.f32 %v1803, %v1803
        %v1805 = vsel %vm423, %v1804, 0.0
        %1806 = vadd.xlane.f32.xlu0 %v1805
        %v1807 = vpop.xlane.xlu0 %1806
        %v1808 = vmul.f32 %v1807, %v1004
        %v1809 = vadd.f32 %v1808, 1e-05
        %v1810 = vrsqrt.pop %v1809
        %v1811 = vmul.f32 %v1803, %v1810
        %v1812 = vlaneseq
        %v1813 = vshrl.u32 %v1812, 7
        %v1814 = vsub.s32 0, %v1813
        %v1815 = vrot.slane %v1199, %v1814
        %v1816 = vmul.f32 %v1811, %v1815
        %v1817 = vlaneseq
        %v1818 = vshrl.u32 %v1817, 7
        %v1819 = vsub.s32 0, %v1818
        %v1820 = vrot.slane %v1200, %v1819
        %v1821 = vadd.f32 %v1816, %v1820
        %v1822 = vpack.c.bf16 %v1821, %v1821
        %s1823 = scalar_lea.vmem %s3, 16
        %v1824 = vld [vmem:[%s1823] sm:$0xf]
        %v1825 = vld [vmem:[%s1823 + $0x4] sm:$0xf]
        %v1826 = vld [vmem:[%s1823 + $0x8] sm:$0xf]
        %v1827 = vld [vmem:[%s1823 + $0xc] sm:$0xf]
        %v1828 = vlaneseq
        %v1829 = vshrl.u32 %v1828, 7
        %v1830 = vsub.s32 0, %v1829
        %v1831 = vrot.slane %v1197, %v1830
        %v1836 = vunpack.c.l.b16 %v1824
        %v1837 = vunpack.c.l.b16 %v1825
        %v1838 = vunpack.c.l.b16 %v1826
        %v1839 = vunpack.c.l.b16 %v1827
        %v1840 = vpack.c.b16 %v1837, %v1836
        %v1841 = vpack.c.b16 %v1839, %v1838
        %v1845 = vsel %vm423, %v1822, 0
        %1847 = vmatprep.subr.bf16.mxu0 0
        %1848 = vmatpush1.bf16.msra.mxu0 %v1840
        %1849 = vmatprep.subr.bf16.mxu0 0
        %1850 = vmatpush1.bf16.msra.mxu0 %v1841
        %1851 = vmatprep.subr.bf16.mxu0 0
        %1852 = vmatpush1.bf16.msra.mxu0 0
        %1853 = vmatprep.subr.bf16.mxu0 0
        %1854 = vmatpush1.bf16.msra.mxu0 0
        %1855 = vmatprep.subr.bf16.mxu0 0
        %1856 = vmatpush1.bf16.msra.mxu0 0
        %1857 = vmatprep.subr.bf16.mxu0 0
        %1858 = vmatpush1.bf16.msra.mxu0 0
        %1859 = vmatprep.subr.bf16.mxu0 0
        %1860 = vmatpush1.bf16.msra.mxu0 0
        %1861 = vmatprep.subr.bf16.mxu0 0
        %1862 = vmatpush1.bf16.msra.mxu0 0
        %1863 = vmatprep.subr.bf16.mxu0 0
        %1864 = vmatpush1.bf16.msra.mxu0 0
        %1865 = vmatprep.subr.bf16.mxu0 0
        %1866 = vmatpush1.bf16.msra.mxu0 0
        %1867 = vmatprep.subr.bf16.mxu0 0
        %1868 = vmatpush1.bf16.msra.mxu0 0
        %1869 = vmatprep.subr.bf16.mxu0 0
        %1870 = vmatpush1.bf16.msra.mxu0 0
        %1871 = vmatprep.subr.bf16.mxu0 0
        %1872 = vmatpush1.bf16.msra.mxu0 0
        %1873 = vmatprep.subr.bf16.mxu0 0
        %1874 = vmatpush1.bf16.msra.mxu0 0
        %1875 = vmatprep.subr.bf16.mxu0 0
        %1876 = vmatpush1.bf16.msra.mxu0 0
        %1877 = vmatprep.subr.bf16.mxu0 0
        %1878 = vmatpush1.bf16.msra.mxu0 0
        %1879 = vmatprep.mubr.bf16.mxu0 0
        %1880 = vmatmul.mubr.bf16.gmra.mrb[0].mxu0 %v1845
        %v1881 = vpop.f32.mrb[0].mxu0
        %v1882 = vadd.f32 %v1831, %v1881
        %v1883 = vpop.f32.mrb[0].mxu0
        %v1884 = vpop.f32.mrb[0].mxu0
        %v1885 = vpop.f32.mrb[0].mxu0
        %1886 = vdwg.mxu0
        %v1887 = vmax.f32 %v1882, 0.0
        %v1888 = vpack.c.bf16 %v1887, %v1887
        %s1889 = scalar_lea.vmem %s4, 32
        %v1890 = vld [vmem:[%s1889] sm:$0xf]
        %v1891 = vld [vmem:[%s1889 + $0x4] sm:$0xf]
        %v1892 = vld [vmem:[%s1889 + $0x8] sm:$0xf]
        %v1893 = vld [vmem:[%s1889 + $0xc] sm:$0xf]
        %v1894 = vld [vmem:[%s1889 + $0x10] sm:$0xf]
        %v1895 = vld [vmem:[%s1889 + $0x14] sm:$0xf]
        %v1896 = vld [vmem:[%s1889 + $0x18] sm:$0xf]
        %v1897 = vld [vmem:[%s1889 + $0x1c] sm:$0xf]
        %v1898 = vlaneseq
        %v1899 = vshrl.u32 %v1898, 7
        %v1900 = vsub.s32 0, %v1899
        %v1901 = vrot.slane %v1198, %v1900
        %v1910 = vunpack.c.l.b16 %v1890
        %v1911 = vunpack.c.l.b16 %v1891
        %v1912 = vunpack.c.l.b16 %v1892
        %v1913 = vunpack.c.l.b16 %v1893
        %v1914 = vunpack.c.l.b16 %v1894
        %v1915 = vunpack.c.l.b16 %v1895
        %v1916 = vunpack.c.l.b16 %v1896
        %v1917 = vunpack.c.l.b16 %v1897
        %v1918 = vpack.c.b16 %v1911, %v1910
        %v1919 = vpack.c.b16 %v1913, %v1912
        %v1920 = vpack.c.b16 %v1915, %v1914
        %v1921 = vpack.c.b16 %v1917, %v1916
        %v1927 = vsel %vm1127, %v1888, 0
        %1929 = vmatprep.subr.bf16.mxu0 0
        %1930 = vmatpush1.bf16.msra.mxu0 %v1918
        %1931 = vmatprep.subr.bf16.mxu0 0
        %1932 = vmatpush1.bf16.msra.mxu0 %v1919
        %1933 = vmatprep.subr.bf16.mxu0 0
        %1934 = vmatpush1.bf16.msra.mxu0 %v1920
        %1935 = vmatprep.subr.bf16.mxu0 0
        %1936 = vmatpush1.bf16.msra.mxu0 %v1921
        %1937 = vmatprep.subr.bf16.mxu0 0
        %1938 = vmatpush1.bf16.msra.mxu0 0
        %1939 = vmatprep.subr.bf16.mxu0 0
        %1940 = vmatpush1.bf16.msra.mxu0 0
        %1941 = vmatprep.subr.bf16.mxu0 0
        %1942 = vmatpush1.bf16.msra.mxu0 0
        %1943 = vmatprep.subr.bf16.mxu0 0
        %1944 = vmatpush1.bf16.msra.mxu0 0
        %1945 = vmatprep.subr.bf16.mxu0 0
        %1946 = vmatpush1.bf16.msra.mxu0 0
        %1947 = vmatprep.subr.bf16.mxu0 0
        %1948 = vmatpush1.bf16.msra.mxu0 0
        %1949 = vmatprep.subr.bf16.mxu0 0
        %1950 = vmatpush1.bf16.msra.mxu0 0
        %1951 = vmatprep.subr.bf16.mxu0 0
        %1952 = vmatpush1.bf16.msra.mxu0 0
        %1953 = vmatprep.subr.bf16.mxu0 0
        %1954 = vmatpush1.bf16.msra.mxu0 0
        %1955 = vmatprep.subr.bf16.mxu0 0
        %1956 = vmatpush1.bf16.msra.mxu0 0
        %1957 = vmatprep.subr.bf16.mxu0 0
        %1958 = vmatpush1.bf16.msra.mxu0 0
        %1959 = vmatprep.subr.bf16.mxu0 0
        %1960 = vmatpush1.bf16.msra.mxu0 0
        %1961 = vmatprep.mubr.bf16.mxu0 0
        %1962 = vmatmul.mubr.bf16.gmra.mrb[0].mxu0 %v1927
        %v1963 = vpop.f32.mrb[0].mxu0
        %v1964 = vadd.f32 %v1901, %v1963
        %v1965 = vpop.f32.mrb[0].mxu0
        %v1966 = vpop.f32.mrb[0].mxu0
        %v1967 = vpop.f32.mrb[0].mxu0
        %1968 = vdwg.mxu0
        %v1969 = vadd.f32 %v1821, %v1964
        %v1970 = vsel %vm423, %v1969, 0.0
        %1971 = vadd.xlane.f32.xlu0 %v1970
        %v1972 = vpop.xlane.xlu0 %1971
        %v1973 = vmul.f32 %v1972, %v1004
        %v1974 = vsub.f32 %v1969, %v1973
        %v1975 = vmul.f32 %v1974, %v1974
        %v1976 = vsel %vm423, %v1975, 0.0
        %1977 = vadd.xlane.f32.xlu0 %v1976
        %v1978 = vpop.xlane.xlu0 %1977
        %v1979 = vmul.f32 %v1978, %v1004
        %v1980 = vadd.f32 %v1979, 1e-05
        %v1981 = vrsqrt.pop %v1980
        %v1982 = vmul.f32 %v1974, %v1981
        %v1983 = vlaneseq
        %v1984 = vshrl.u32 %v1983, 7
        %v1985 = vsub.s32 0, %v1984
        %v1986 = vrot.slane %v1201, %v1985
        %v1987 = vmul.f32 %v1982, %v1986
        %v1988 = vlaneseq
        %v1989 = vshrl.u32 %v1988, 7
        %v1990 = vsub.s32 0, %v1989
        %v1991 = vrot.slane %v1202, %v1990
        %v1992 = vadd.f32 %v1987, %v1991
        %v1993 = vld [vmem:[%s8 + $0x10] sm:$0x1]
        %v1994 = vld [vmem:[%s8 + $0x11] sm:$0x1]
        %v1995 = vld [vmem:[%s8 + $0x12] sm:$0x1]
        %v1996 = vpack.c.bf16 %v1992, %v1992
        %v1997 = vld [vmem:[#allocation5] sm:$0xf]
        %v1998 = vld [vmem:[#allocation5 + $0x4] sm:$0xf]
        %v1999 = vld [vmem:[#allocation5 + $0x8] sm:$0xf]
        %v2000 = vld [vmem:[#allocation5 + $0xc] sm:$0xf]
        %v2001 = vlaneseq
        %v2002 = vshrl.u32 %v2001, 7
        %v2003 = vsub.s32 0, %v2002
        %v2004 = vrot.slane %v1993, %v2003
        %v2009 = vunpack.c.l.b16 %v1997
        %v2010 = vunpack.c.l.b16 %v1998
        %v2011 = vunpack.c.l.b16 %v1999
        %v2012 = vunpack.c.l.b16 %v2000
        %v2013 = vpack.c.b16 %v2010, %v2009
        %v2014 = vpack.c.b16 %v2012, %v2011
        %v2018 = vsel %vm423, %v1996, 0
        %2020 = vmatprep.subr.bf16.mxu0 0
        %2021 = vmatpush1.bf16.msra.mxu0 %v2013
        %2022 = vmatprep.subr.bf16.mxu0 0
        %2023 = vmatpush1.bf16.msra.mxu0 %v2014
        %2024 = vmatprep.subr.bf16.mxu0 0
        %2025 = vmatpush1.bf16.msra.mxu0 0
        %2026 = vmatprep.subr.bf16.mxu0 0
        %2027 = vmatpush1.bf16.msra.mxu0 0
        %2028 = vmatprep.subr.bf16.mxu0 0
        %2029 = vmatpush1.bf16.msra.mxu0 0
        %2030 = vmatprep.subr.bf16.mxu0 0
        %2031 = vmatpush1.bf16.msra.mxu0 0
        %2032 = vmatprep.subr.bf16.mxu0 0
        %2033 = vmatpush1.bf16.msra.mxu0 0
        %2034 = vmatprep.subr.bf16.mxu0 0
        %2035 = vmatpush1.bf16.msra.mxu0 0
        %2036 = vmatprep.subr.bf16.mxu0 0
        %2037 = vmatpush1.bf16.msra.mxu0 0
        %2038 = vmatprep.subr.bf16.mxu0 0
        %2039 = vmatpush1.bf16.msra.mxu0 0
        %2040 = vmatprep.subr.bf16.mxu0 0
        %2041 = vmatpush1.bf16.msra.mxu0 0
        %2042 = vmatprep.subr.bf16.mxu0 0
        %2043 = vmatpush1.bf16.msra.mxu0 0
        %2044 = vmatprep.subr.bf16.mxu0 0
        %2045 = vmatpush1.bf16.msra.mxu0 0
        %2046 = vmatprep.subr.bf16.mxu0 0
        %2047 = vmatpush1.bf16.msra.mxu0 0
        %2048 = vmatprep.subr.bf16.mxu0 0
        %2049 = vmatpush1.bf16.msra.mxu0 0
        %2050 = vmatprep.subr.bf16.mxu0 0
        %2051 = vmatpush1.bf16.msra.mxu0 0
        %2052 = vmatprep.mubr.bf16.mxu0 0
        %2053 = vmatmul.mubr.bf16.gmra.mrb[0].mxu0 %v2018
        %v2054 = vpop.f32.mrb[0].mxu0
        %v2055 = vadd.f32 %v2004, %v2054
        %v2056 = vpop.f32.mrb[0].mxu0
        %v2057 = vpop.f32.mrb[0].mxu0
        %v2058 = vpop.f32.mrb[0].mxu0
        %2059 = vdwg.mxu0
        %v2060 = vmax.f32 %v2055, 0.0
        %v2061 = vpack.c.bf16 %v2060, %v2060
        %v2062 = vld [vmem:[#allocation7] sm:$0xf]
        %v2063 = vld [vmem:[#allocation7 + $0x4] sm:$0xf]
        %v2064 = vld [vmem:[#allocation7 + $0x8] sm:$0xf]
        %v2065 = vld [vmem:[#allocation7 + $0xc] sm:$0xf]
        %v2066 = vlaneseq
        %v2067 = vshrl.u32 %v2066, 7
        %v2068 = vsub.s32 0, %v2067
        %v2069 = vrot.slane %v1994, %v2068
        %v2074 = vunpack.c.l.b16 %v2062
        %v2075 = vunpack.c.l.b16 %v2063
        %v2076 = vunpack.c.l.b16 %v2064
        %v2077 = vunpack.c.l.b16 %v2065
        %v2078 = vpack.c.b16 %v2075, %v2074
        %v2079 = vpack.c.b16 %v2077, %v2076
        %v2083 = vsel %vm423, %v2061, 0
        %2085 = vmatprep.subr.bf16.mxu0 0
        %2086 = vmatpush1.bf16.msra.mxu0 %v2078
        %2087 = vmatprep.subr.bf16.mxu0 0
        %2088 = vmatpush1.bf16.msra.mxu0 %v2079
        %2089 = vmatprep.subr.bf16.mxu0 0
        %2090 = vmatpush1.bf16.msra.mxu0 0
        %2091 = vmatprep.subr.bf16.mxu0 0
        %2092 = vmatpush1.bf16.msra.mxu0 0
        %2093 = vmatprep.subr.bf16.mxu0 0
        %2094 = vmatpush1.bf16.msra.mxu0 0
        %2095 = vmatprep.subr.bf16.mxu0 0
        %2096 = vmatpush1.bf16.msra.mxu0 0
        %2097 = vmatprep.subr.bf16.mxu0 0
        %2098 = vmatpush1.bf16.msra.mxu0 0
        %2099 = vmatprep.subr.bf16.mxu0 0
        %2100 = vmatpush1.bf16.msra.mxu0 0
        %2101 = vmatprep.subr.bf16.mxu0 0
        %2102 = vmatpush1.bf16.msra.mxu0 0
        %2103 = vmatprep.subr.bf16.mxu0 0
        %2104 = vmatpush1.bf16.msra.mxu0 0
        %2105 = vmatprep.subr.bf16.mxu0 0
        %2106 = vmatpush1.bf16.msra.mxu0 0
        %2107 = vmatprep.subr.bf16.mxu0 0
        %2108 = vmatpush1.bf16.msra.mxu0 0
        %2109 = vmatprep.subr.bf16.mxu0 0
        %2110 = vmatpush1.bf16.msra.mxu0 0
        %2111 = vmatprep.subr.bf16.mxu0 0
        %2112 = vmatpush1.bf16.msra.mxu0 0
        %2113 = vmatprep.subr.bf16.mxu0 0
        %2114 = vmatpush1.bf16.msra.mxu0 0
        %2115 = vmatprep.subr.bf16.mxu0 0
        %2116 = vmatpush1.bf16.msra.mxu0 0
        %2117 = vmatprep.mubr.bf16.mxu0 0
        %2118 = vmatmul.mubr.bf16.gmra.mrb[0].mxu0 %v2083
        %v2119 = vpop.f32.mrb[0].mxu0
        %v2120 = vadd.f32 %v2069, %v2119
        %v2121 = vpop.f32.mrb[0].mxu0
        %v2122 = vpop.f32.mrb[0].mxu0
        %v2123 = vpop.f32.mrb[0].mxu0
        %2124 = vdwg.mxu0
        %v2125 = vmax.f32 %v2120, 0.0
        %v2126 = vpack.c.bf16 %v2125, %v2125
        %v2127 = vld [vmem:[#allocation8] sm:$0xf]
        %v2128 = vld [vmem:[#allocation8 + $0x4] sm:$0xf]
        %v2129 = vld [vmem:[#allocation8 + $0x8] sm:$0xf]
        %v2130 = vld [vmem:[#allocation8 + $0xc] sm:$0xf]
        %v2131 = vlaneseq
        %v2132 = vshrl.u32 %v2131, 7
        %v2133 = vsub.s32 0, %v2132
        %v2134 = vrot.slane %v1995, %v2133
        %v2139 = vunpack.c.l.b16 %v2127
        %v2140 = vunpack.c.l.b16 %v2128
        %v2141 = vunpack.c.l.b16 %v2129
        %v2142 = vunpack.c.l.b16 %v2130
        %v2143 = vpack.c.b16 %v2140, %v2139
        %v2144 = vpack.c.b16 %v2142, %v2141
        %v2148 = vsel %vm423, %v2126, 0
        %2150 = vmatprep.subr.bf16.mxu0 0
        %2151 = vmatpush1.bf16.msra.mxu0 %v2143
        %2152 = vmatprep.subr.bf16.mxu0 0
        %2153 = vmatpush1.bf16.msra.mxu0 %v2144
        %2154 = vmatprep.subr.bf16.mxu0 0
        %2155 = vmatpush1.bf16.msra.mxu0 0
        %2156 = vmatprep.subr.bf16.mxu0 0
        %2157 = vmatpush1.bf16.msra.mxu0 0
        %2158 = vmatprep.subr.bf16.mxu0 0
        %2159 = vmatpush1.bf16.msra.mxu0 0
        %2160 = vmatprep.subr.bf16.mxu0 0
        %2161 = vmatpush1.bf16.msra.mxu0 0
        %2162 = vmatprep.subr.bf16.mxu0 0
        %2163 = vmatpush1.bf16.msra.mxu0 0
        %2164 = vmatprep.subr.bf16.mxu0 0
        %2165 = vmatpush1.bf16.msra.mxu0 0
        %2166 = vmatprep.subr.bf16.mxu0 0
        %2167 = vmatpush1.bf16.msra.mxu0 0
        %2168 = vmatprep.subr.bf16.mxu0 0
        %2169 = vmatpush1.bf16.msra.mxu0 0
        %2170 = vmatprep.subr.bf16.mxu0 0
        %2171 = vmatpush1.bf16.msra.mxu0 0
        %2172 = vmatprep.subr.bf16.mxu0 0
        %2173 = vmatpush1.bf16.msra.mxu0 0
        %2174 = vmatprep.subr.bf16.mxu0 0
        %2175 = vmatpush1.bf16.msra.mxu0 0
        %2176 = vmatprep.subr.bf16.mxu0 0
        %2177 = vmatpush1.bf16.msra.mxu0 0
        %2178 = vmatprep.subr.bf16.mxu0 0
        %2179 = vmatpush1.bf16.msra.mxu0 0
        %2180 = vmatprep.subr.bf16.mxu0 0
        %2181 = vmatpush1.bf16.msra.mxu0 0
        %2182 = vmatprep.mubr.bf16.mxu0 0
        %2183 = vmatmul.mubr.bf16.gmra.mrb[0].mxu0 %v2148
        %v2184 = vpop.f32.mrb[0].mxu0
        %v2185 = vadd.f32 %v2134, %v2184
        %v2186 = vpop.f32.mrb[0].mxu0
        %v2187 = vpop.f32.mrb[0].mxu0
        %v2188 = vpop.f32.mrb[0].mxu0
        %2189 = vdwg.mxu0
        %v2190 = vmul.f32 %v2185, 0.5
        %v2191 = vtanh.pop %v2190
        %v2192 = vadd.f32 %v2191, 1.0
        %v2193 = vmul.f32 %v2192, 0.5
        %2194 = vst [vmem:[%s391] sm:$0xff] %v2193
        %s2195 = sand.u32 %s230, 1
        %s2196 = scalar_lea.sflag [#allocation4], %s2195
        %s2197 = sand.u32 %s230, 1
        %s2198 = smul.addr %s2197, 8
        %s2199 = scalar_lea.vmem [#allocation10], %s2198
        // Predicated region
        $region73: #{tpu_custom_call.1} parent=55 // pred_check
          %p2200 = pneg %p240
        $region74: #{tpu_custom_call.1} parent=55 // pred_check_branch
          %2202 = sbr.rel (%p2200) target = $region76
        $region75: #{tpu_custom_call.1} parent=55 // pred_region
          %s2204 = ssub.s32 128, 128
          %2205 = vsyncadd %s2196, %s2204
          %s2206 = smul.addr %s28, 128
          %s2207 = scalar_lea.hbm %s9, %s2206
          %s2209 = sshll.u32 %s2199, 4
          %s2210 = int_to_ptr.vmem [resolvable:$true] %s2209
          %2212 = dma.vmem_to_hbm [thread:$0]  %s2210, 128, %s2207, %s2196
        $region76: #{tpu_custom_call.1} parent=55 // pred_fallthru
          _
      $region56: #{tpu_custom_call.1} parent=5 // pred_fallthru
        _
      %p2213 = scmp.le.s32.totalorder 2, %s23
      // Predicated region
      $region77: #{tpu_custom_call.1} parent=5 // pred_check
        %p2214 = pneg %p2213
      $region78: #{tpu_custom_call.1} parent=5 // pred_check_branch
        %2216 = sbr.rel (%p2214) target = $region80
      $region79: #{tpu_custom_call.1} parent=5 // pred_region
        %s2217 = ssub.s32 %s23, 2
        // Predicated region
        $region81: #{tpu_custom_call.1} parent=79 // pred_check
          %p2218 = pneg %p246
        $region82: #{tpu_custom_call.1} parent=79 // pred_check_branch
          %2220 = sbr.rel (%p2218) target = $region84
        $region83: #{tpu_custom_call.1} parent=79 // pred_region
          %s2221 = sand.u32 %s231, 1
          %s2222 = scalar_lea.sflag [#allocation4], %s2221
          %s2223 = sand.u32 %s231, 1
          %s2224 = smul.addr %s2223, 8
          %s2225 = scalar_lea.vmem [#allocation10], %s2224
          %2226 = dma.done %s2222, 128
        $region84: #{tpu_custom_call.1} parent=79 // pred_fallthru
          _
      $region80: #{tpu_custom_call.1} parent=5 // pred_fallthru
        _
    $region6: #{tpu_custom_call.1} parent=1 // loop_footer
      %s27 = sadd.s32 1, %s23
    $region7: #{tpu_custom_call.1} parent=1 // loop_footer_branch
      %22 = sbr.rel target = $region3
    $region8: #{tpu_custom_call.1} parent=1 // loop_exit
      _
    %2227 = vsyncpa [#allocation3], 1
    %s2228 = scalar_lea.sflag [#allocation3], 1
    %2229 = vsyncpa %s2228, 1
    %2230 = vsyncpa [#allocation6], 1
    %2231 = vsyncpa [#allocation9], 1
    %2232 = vsyncpa [#allocation4], 1
    %s2233 = scalar_lea.sflag [#allocation4], 1
    %2234 = vsyncpa %s2233, 1

</llo_original>
